<compile_context>
chip_gen: v5e
topology: v5e:2x2
jax: 0.10.0
libtpu: 0.0.40
codegen_flags: <defaults>
</compile_context>

<pallas_src>
import functools

import jax
import jax.numpy as jnp
from jax import lax
from jax.experimental import pallas as pl
from jax.experimental.pallas import tpu as pltpu

POWER_ITERATIONS = 1
EPS = 1e-12


# -----------------------------------------------------------------------------
# In-kernel helpers
# -----------------------------------------------------------------------------
def _spectral_stats(w, u):
    """PyTorch-style power iteration.  Returns (1/sigma, u_new, v_new).

    w: (height, width) f32 raw weight view, u: (1, height) f32.
    The weight itself is NOT scaled here — the caller folds 1/sigma into the
    conv outputs so this serial chain never gates an MXU push."""
    v = None
    for _ in range(POWER_ITERATIONS):
        wv = jnp.dot(u, w, preferred_element_type=jnp.float32)            # W^T u : (1, width)
        v = wv / (jnp.sqrt(jnp.sum(wv * wv)) + EPS)
        wu = lax.dot_general(v, w, (((1,), (1,)), ((), ())),
                             preferred_element_type=jnp.float32)           # W v : (1, height)
        u = wu / (jnp.sqrt(jnp.sum(wu * wu)) + EPS)
    wv_final = lax.dot_general(v, w, (((1,), (1,)), ((), ())),
                               preferred_element_type=jnp.float32)         # (1, height)
    sigma = jnp.sum(u * wv_final)
    # Exact divide (scalar); plenty inside the 1e-4 tolerance.
    return 1.0 / sigma, u, v


def _fill_im2col(src, p_ref, h_i, w_i, *, C, H, W, NHW):
    """Write the (9C, NHW) im2col matrix of a 3x3 / pad=1 conv into p_ref.

    src : (C, NHW) in-register value (N images concatenated along lanes).
    h_i, w_i : hoisted (C, NHW) int32 lane->(h, w) decode, shared by all taps.

    Row order is tap-major / channel-minor: row = (kh*3 + kw)*C + ci (the 3x3
    weights passed to the kernel are permuted to match).  Each tap is one
    pltpu.roll (XLU) + border mask + full-width, lane-aligned store: lanes
    that wrap around the roll are always out-of-image, so the same masks kill
    them and no zero-init of p_ref is needed."""
    t = 0
    for kh in range(3):
        dh = kh - 1
        for kw in range(3):
            dw = kw - 1
            s = dh * W + dw                    # flat-lane shift of this tap
            if s == 0:
                tap = src
            else:
                # want tap[l] = src[l + s]  (np.roll semantics => shift = -s)
                tap = pltpu.roll(src, (-s) % NHW, axis=1)
            cond = None
            if dh == -1:
                cond = h_i >= 1
            elif dh == 1:
                cond = h_i < (H - 1)
            if dw == -1:
                cw = w_i >= 1
                cond = cw if cond is None else jnp.logical_and(cond, cw)
            elif dw == 1:
                cw = w_i < (W - 1)
                cond = cw if cond is None else jnp.logical_and(cond, cw)
            if cond is not None:
                tap = jnp.where(cond, tap, 0.0)
            p_ref[t * C:(t + 1) * C, :] = tap          # full-width, unmasked vst
            t += 1


# -----------------------------------------------------------------------------
# Fused ProjBlock kernel (single grid-less launch)
# -----------------------------------------------------------------------------
def _projblock_kernel(x_ref,
                      w1_ref, b1_ref, u1_ref,
                      w3a_ref, b3a_ref, u3a_ref,
                      w3b_ref, b3b_ref, u3b_ref,
                      y_ref, uv_ref,
                      p_ref, *, N, C, H, W):
    HW = H * W
    NHW = N * HW
    K9 = 9 * C

    # ---- batched activation (C, N*HW): lane offsets n*HW are 128-aligned so
    #      this concat is pure vreg placement — no staging copy, no store/load.
    xb = jnp.concatenate([x_ref[n * C:(n + 1) * C, :] for n in range(N)],
                         axis=1)

    # ---- hoisted lane -> (h, w) decode shared by all 18 im2col taps ----
    lane = lax.broadcasted_iota(jnp.int32, (C, NHW), 1)
    if (HW & (HW - 1)) == 0 and (W & (W - 1)) == 0:   # powers of two: shifts/ands
        hw = jnp.bitwise_and(lane, HW - 1)
        h_i = jnp.right_shift(hw, W.bit_length() - 1)
        w_i = jnp.bitwise_and(lane, W - 1)
    else:
        hw = lane % HW
        h_i = hw // W
        w_i = hw - h_i * W

    # ---- im2col of the first 3x3 conv: issued early so it overlaps the
    #      serial power-iteration chains below (they have no data dependence).
    _fill_im2col(xb, p_ref, h_i, w_i, C=C, H=H, W=W, NHW=NHW)

    # ---- spectral sigmas (tiny 2-D weight views); matmuls below use the RAW
    #      weights, 1/sigma is applied to the conv outputs instead. ----
    inv_s1, u1n, v1n = _spectral_stats(w1_ref[...], u1_ref[...])
    inv_sa, u3an, v3an = _spectral_stats(w3a_ref[...], u3a_ref[...])
    inv_sb, u3bn, v3bn = _spectral_stats(w3b_ref[...], u3b_ref[...])

    # pack the six tiny u/v vectors into one lane-padded buffer (single HBM DMA)
    uv_ref[...] = jnp.zeros_like(uv_ref)
    uv_ref[0:1, 0:C] = u1n
    uv_ref[1:2, 0:C] = v1n
    uv_ref[2:3, 0:C] = u3an
    uv_ref[3:4, 0:K9] = v3an
    uv_ref[4:5, 0:C] = u3bn
    uv_ref[5:6, 0:K9] = v3bn

    # ---- 1x1 conv: one (C,C) @ (C, N*HW) matmul, raw weight, scale after ----
    x1 = jnp.dot(w1_ref[...], xb, preferred_element_type=jnp.float32)
    x1 = x1 * inv_s1 + b1_ref[...]

    # ---- first 3x3 conv + ReLU: one (C,9C) @ (9C, N*HW) matmul ----
    h = jnp.dot(w3a_ref[...], p_ref[...], preferred_element_type=jnp.float32)
    h = jnp.maximum(h * inv_sa + b3a_ref[...], 0.0)

    # ---- second 3x3 conv (im2col rebuilt straight from the in-vreg h) ----
    _fill_im2col(h, p_ref, h_i, w_i, C=C, H=H, W=W, NHW=NHW)
    x2 = jnp.dot(w3b_ref[...], p_ref[...], preferred_element_type=jnp.float32)
    x2 = x2 * inv_sb + b3b_ref[...]

    # ---- residual sum; per-image lane-dense (C, HW) stores, NCHW-ordered ----
    yb = x1 + x2 + xb
    for n in range(N):
        y_ref[n * C:(n + 1) * C, :] = yb[:, n * HW:(n + 1) * HW]


# -----------------------------------------------------------------------------
# Wrapper
# -----------------------------------------------------------------------------
def projblock_forward(x, params):
    """x: (N, C, H, W) f32.  Returns (y, new_state) with updated u/v buffers.

    Note: the PyTorch module updates its u/v buffers in place; here they are
    returned functionally in `new_state`."""
    N, C, H, W = x.shape
    HW = H * W
    K9 = 9 * C
    LPAD = max(128, ((K9 + 127) // 128) * 128)   # lane-padded u/v output width

    # KB-scale weight glue: 2-D views + tap-major/channel-minor permute of the
    # 3x3 kernels so their columns match the in-kernel im2col row order.
    w1_2d = params["w1"].reshape(C, C)
    w3a_p = jnp.transpose(params["w3a"], (0, 2, 3, 1)).reshape(C, K9)
    w3b_p = jnp.transpose(params["w3b"], (0, 2, 3, 1)).reshape(C, K9)

    x2d = x.reshape(N * C, HW)                 # free (contiguous) NCHW view

    flops = 2 * N * HW * C * (C + K9 + K9)     # three conv matmuls
    bytes_accessed = 4 * (2 * N * C * HW + C * C + 2 * C * K9
                          + 6 * C + 8 * LPAD)

    kernel = functools.partial(_projblock_kernel, N=N, C=C, H=H, W=W)
    y2d, uv = pl.pallas_call(
        kernel,
        out_shape=(
            jax.ShapeDtypeStruct((N * C, HW), jnp.float32),   # output (NCHW view)
            jax.ShapeDtypeStruct((8, LPAD), jnp.float32),     # packed u/v state
        ),
        scratch_shapes=[
            # im2col staging: 9*C*N*HW*4 bytes (~144 KB here). Re-tile before
            # scaling C/H/W toward v7x's 64 MiB VMEM.
            pltpu.VMEM((K9, N * HW), jnp.float32),
        ],
        cost_estimate=pl.CostEstimate(flops=flops, transcendentals=0,
                                      bytes_accessed=bytes_accessed),
    )(x2d,
      w1_2d, params["b1"].reshape(C, 1), params["u1"].reshape(1, C),
      w3a_p, params["b3a"].reshape(C, 1), params["u3a"].reshape(1, C),
      w3b_p, params["b3b"].reshape(C, 1), params["u3b"].reshape(1, C))

    y = y2d.reshape(N, C, H, W)
    # convert v back to PyTorch's (ci, kh, kw) flattening order
    unperm = lambda v: v.reshape(3, 3, C).transpose(2, 0, 1).reshape(K9)
    new_state = dict(u1=uv[0, :C], v1=uv[1, :C],
                     u3a=uv[2, :C], v3a=unperm(uv[3, :K9]),
                     u3b=uv[4, :C], v3b=unperm(uv[5, :K9]))
    return y, new_state


# -----------------------------------------------------------------------------
# Pure-JAX reference (correctness check)
# -----------------------------------------------------------------------------
def _l2normalize(v, eps=EPS):
    return v / (jnp.linalg.norm(v) + eps)


def _sn_reference(w, u):
    height = w.shape[0]
    w2d = w.reshape(height, -1)
    v = None
    for _ in range(POWER_ITERATIONS):
        v = _l2normalize(jnp.dot(w2d.T, u, precision=lax.Precision.HIGHEST))
        u = _l2normalize(jnp.dot(w2d, v, precision=lax.Precision.HIGHEST))
    sigma = jnp.dot(u, jnp.dot(w2d, v, precision=lax.Precision.HIGHEST),
                    precision=lax.Precision.HIGHEST)
    return (w2d / sigma).reshape(w.shape), u, v


def reference_forward(x, params):
    C = params["b1"].shape[0]

    def conv(x_, w_, pad):
        return lax.conv_general_dilated(
            x_, w_, window_strides=(1, 1), padding=((pad, pad), (pad, pad)),
            dimension_numbers=("NCHW", "OIHW", "NCHW"),
            precision=lax.Precision.HIGHEST)

    w1sn, u1n, v1n = _sn_reference(params["w1"], params["u1"])
    w3asn, u3an, v3an = _sn_reference(params["w3a"], params["u3a"])
    w3bsn, u3bn, v3bn = _sn_reference(params["w3b"], params["u3b"])

    x1 = conv(x, w1sn, 0) + params["b1"].reshape(1, C, 1, 1)
    h = jax.nn.relu(conv(x, w3asn, 1) + params["b3a"].reshape(1, C, 1, 1))
    x2 = conv(h, w3bsn, 1) + params["b3b"].reshape(1, C, 1, 1)
    y = x1 + x2 + x
    state = dict(u1=u1n, v1=v1n, u3a=u3an, v3a=v3an, u3b=u3bn, v3b=v3bn)
    return y, state


if __name__ == "__main__":
    key = jax.random.PRNGKey(0)
    keys = jax.random.split(key, 10)

    # ProjBlock requires in_channel == out_channel (residual x1 + x2 + x).
    N, C, H, W = 2, 8, 16, 16
    KH = KW = 3

    x = jax.random.normal(keys[0], (N, C, H, W), jnp.float32)
    params = dict(
        w1=jax.random.normal(keys[1], (C, C, 1, 1), jnp.float32) * 0.1,
        b1=jax.random.normal(keys[2], (C,), jnp.float32) * 0.1,
        u1=_l2normalize(jax.random.normal(keys[3], (C,), jnp.float32)),
        w3a=jax.random.normal(keys[4], (C, C, KH, KW), jnp.float32) * 0.1,
        b3a=jax.random.normal(keys[5], (C,), jnp.float32) * 0.1,
        u3a=_l2normalize(jax.random.normal(keys[6], (C,), jnp.float32)),
        w3b=jax.random.normal(keys[7], (C, C, KH, KW), jnp.float32) * 0.1,
        b3b=jax.random.normal(keys[8], (C,), jnp.float32) * 0.1,
        u3b=_l2normalize(jax.random.normal(keys[9], (C,), jnp.float32)),
    )
    # (the PyTorch `v` buffers are overwritten before first use with
    #  power_iterations=1, so they are not inputs here.)

    y, state = jax.jit(projblock_forward)(x, params)
    jax.block_until_ready((y, state))

    y_ref, state_ref = reference_forward(x, params)
    assert y.shape == (N, C, H, W)
    assert jnp.allclose(y, y_ref, atol=1e-4, rtol=1e-4), (
        f"output max err {jnp.max(jnp.abs(y - y_ref))}")
    for name in ("u1", "v1", "u3a", "v3a", "u3b", "v3b"):
        assert jnp.allclose(state[name], state_ref[name], atol=1e-4, rtol=1e-4), (
            f"{name} max err {jnp.max(jnp.abs(state[name] - state_ref[name]))}")

    print("KERNEL_OK")
</pallas_src>

<mosaic_0001>
module attributes {stable_mosaic.version = 11 : i64} {
  func.func @_projblock_kernel(%arg0: memref<16x256xf32, #tpu.memory_space<vmem>>, %arg1: memref<8x8xf32, #tpu.memory_space<vmem>>, %arg2: memref<8x1xf32, #tpu.memory_space<vmem>>, %arg3: memref<1x8xf32, #tpu.memory_space<vmem>>, %arg4: memref<8x72xf32, #tpu.memory_space<vmem>>, %arg5: memref<8x1xf32, #tpu.memory_space<vmem>>, %arg6: memref<1x8xf32, #tpu.memory_space<vmem>>, %arg7: memref<8x72xf32, #tpu.memory_space<vmem>>, %arg8: memref<8x1xf32, #tpu.memory_space<vmem>>, %arg9: memref<1x8xf32, #tpu.memory_space<vmem>>, %arg10: memref<16x256xf32, #tpu.memory_space<vmem>>, %arg11: memref<8x128xf32, #tpu.memory_space<vmem>>, %arg12: memref<72x512xf32, #tpu.memory_space<vmem>>) attributes {dimension_semantics = [], scalar_prefetch = 0 : i64, scratch_operands = 1 : i64, tpu.core_type = #tpu.core_type<tc>} {
    %c0 = arith.constant 0 : index
    %c0_0 = arith.constant 0 : index
    %0 = vector.load %arg0[%c0, %c0_0] : memref<16x256xf32, #tpu.memory_space<vmem>>, vector<8x256xf32>
    %c8 = arith.constant 8 : index
    %c0_1 = arith.constant 0 : index
    %1 = vector.load %arg0[%c8, %c0_1] : memref<16x256xf32, #tpu.memory_space<vmem>>, vector<8x256xf32>
    %2 = tpu.concatenate %0, %1 in 1 : vector<8x256xf32>, vector<8x256xf32> -> vector<8x512xf32>
    %3 = tpu.iota {dimensions = array<i32: 1>} : vector<8x512xi32>
    %c255_i32 = arith.constant 255 : i32
    %4 = vector.broadcast %c255_i32 : i32 to vector<8x512xi32>
    %5 = arith.andi %3, %4 : vector<8x512xi32>
    %c4_i32 = arith.constant 4 : i32
    %6 = vector.broadcast %c4_i32 : i32 to vector<8x512xi32>
    %7 = arith.shrsi %5, %6 : vector<8x512xi32>
    %c15_i32 = arith.constant 15 : i32
    %8 = vector.broadcast %c15_i32 : i32 to vector<8x512xi32>
    %9 = arith.andi %3, %8 : vector<8x512xi32>
    %c17_i32 = arith.constant 17 : i32
    %10 = tpu.dynamic_rotate %2 by %c17_i32 dim 1 : vector<8x512xf32>, i32 -> vector<8x512xf32>
    %c1_i32 = arith.constant 1 : i32
    %11 = vector.broadcast %c1_i32 : i32 to vector<8x512xi32>
    %12 = arith.cmpi sge, %7, %11 : vector<8x512xi32>
    %c1_i32_2 = arith.constant 1 : i32
    %13 = vector.broadcast %c1_i32_2 : i32 to vector<8x512xi32>
    %14 = arith.cmpi sge, %9, %13 : vector<8x512xi32>
    %15 = arith.andi %12, %14 : vector<8x512xi1>
    %cst = arith.constant 0.000000e+00 : f32
    %16 = vector.broadcast %cst : f32 to vector<8x512xf32>
    %17 = arith.select %15, %10, %16 : vector<8x512xi1>, vector<8x512xf32>
    %c0_3 = arith.constant 0 : index
    %c0_4 = arith.constant 0 : index
    %18 = vector.load %arg12[%c0_3, %c0_4] : memref<72x512xf32, #tpu.memory_space<vmem>>, vector<8x512xf32>
    tpu.vector_store %arg12[%c0_3, %c0_4], %17 {strides = array<i32>} : memref<72x512xf32, #tpu.memory_space<vmem>>, vector<8x512xf32>,
    %c16_i32 = arith.constant 16 : i32
    %19 = tpu.dynamic_rotate %2 by %c16_i32 dim 1 : vector<8x512xf32>, i32 -> vector<8x512xf32>
    %c1_i32_5 = arith.constant 1 : i32
    %20 = vector.broadcast %c1_i32_5 : i32 to vector<8x512xi32>
    %21 = arith.cmpi sge, %7, %20 : vector<8x512xi32>
    %cst_6 = arith.constant 0.000000e+00 : f32
    %22 = vector.broadcast %cst_6 : f32 to vector<8x512xf32>
    %23 = arith.select %21, %19, %22 : vector<8x512xi1>, vector<8x512xf32>
    %c8_7 = arith.constant 8 : index
    %c0_8 = arith.constant 0 : index
    %24 = vector.load %arg12[%c8_7, %c0_8] : memref<72x512xf32, #tpu.memory_space<vmem>>, vector<8x512xf32>
    tpu.vector_store %arg12[%c8_7, %c0_8], %23 {strides = array<i32>} : memref<72x512xf32, #tpu.memory_space<vmem>>, vector<8x512xf32>,
    %c15_i32_9 = arith.constant 15 : i32
    %25 = tpu.dynamic_rotate %2 by %c15_i32_9 dim 1 : vector<8x512xf32>, i32 -> vector<8x512xf32>
    %c1_i32_10 = arith.constant 1 : i32
    %26 = vector.broadcast %c1_i32_10 : i32 to vector<8x512xi32>
    %27 = arith.cmpi sge, %7, %26 : vector<8x512xi32>
    %c15_i32_11 = arith.constant 15 : i32
    %28 = vector.broadcast %c15_i32_11 : i32 to vector<8x512xi32>
    %29 = arith.cmpi slt, %9, %28 : vector<8x512xi32>
    %30 = arith.andi %27, %29 : vector<8x512xi1>
    %cst_12 = arith.constant 0.000000e+00 : f32
    %31 = vector.broadcast %cst_12 : f32 to vector<8x512xf32>
    %32 = arith.select %30, %25, %31 : vector<8x512xi1>, vector<8x512xf32>
    %c16 = arith.constant 16 : index
    %c0_13 = arith.constant 0 : index
    %33 = vector.load %arg12[%c16, %c0_13] : memref<72x512xf32, #tpu.memory_space<vmem>>, vector<8x512xf32>
    tpu.vector_store %arg12[%c16, %c0_13], %32 {strides = array<i32>} : memref<72x512xf32, #tpu.memory_space<vmem>>, vector<8x512xf32>,
    %c1_i32_14 = arith.constant 1 : i32
    %34 = tpu.dynamic_rotate %2 by %c1_i32_14 dim 1 : vector<8x512xf32>, i32 -> vector<8x512xf32>
    %c1_i32_15 = arith.constant 1 : i32
    %35 = vector.broadcast %c1_i32_15 : i32 to vector<8x512xi32>
    %36 = arith.cmpi sge, %9, %35 : vector<8x512xi32>
    %cst_16 = arith.constant 0.000000e+00 : f32
    %37 = vector.broadcast %cst_16 : f32 to vector<8x512xf32>
    %38 = arith.select %36, %34, %37 : vector<8x512xi1>, vector<8x512xf32>
    %c24 = arith.constant 24 : index
    %c0_17 = arith.constant 0 : index
    %39 = vector.load %arg12[%c24, %c0_17] : memref<72x512xf32, #tpu.memory_space<vmem>>, vector<8x512xf32>
    tpu.vector_store %arg12[%c24, %c0_17], %38 {strides = array<i32>} : memref<72x512xf32, #tpu.memory_space<vmem>>, vector<8x512xf32>,
    %c32 = arith.constant 32 : index
    %c0_18 = arith.constant 0 : index
    %40 = vector.load %arg12[%c32, %c0_18] : memref<72x512xf32, #tpu.memory_space<vmem>>, vector<8x512xf32>
    tpu.vector_store %arg12[%c32, %c0_18], %2 {strides = array<i32>} : memref<72x512xf32, #tpu.memory_space<vmem>>, vector<8x512xf32>,
    %c511_i32 = arith.constant 511 : i32
    %41 = tpu.dynamic_rotate %2 by %c511_i32 dim 1 : vector<8x512xf32>, i32 -> vector<8x512xf32>
    %c15_i32_19 = arith.constant 15 : i32
    %42 = vector.broadcast %c15_i32_19 : i32 to vector<8x512xi32>
    %43 = arith.cmpi slt, %9, %42 : vector<8x512xi32>
    %cst_20 = arith.constant 0.000000e+00 : f32
    %44 = vector.broadcast %cst_20 : f32 to vector<8x512xf32>
    %45 = arith.select %43, %41, %44 : vector<8x512xi1>, vector<8x512xf32>
    %c40 = arith.constant 40 : index
    %c0_21 = arith.constant 0 : index
    %46 = vector.load %arg12[%c40, %c0_21] : memref<72x512xf32, #tpu.memory_space<vmem>>, vector<8x512xf32>
    tpu.vector_store %arg12[%c40, %c0_21], %45 {strides = array<i32>} : memref<72x512xf32, #tpu.memory_space<vmem>>, vector<8x512xf32>,
    %c497_i32 = arith.constant 497 : i32
    %47 = tpu.dynamic_rotate %2 by %c497_i32 dim 1 : vector<8x512xf32>, i32 -> vector<8x512xf32>
    %c15_i32_22 = arith.constant 15 : i32
    %48 = vector.broadcast %c15_i32_22 : i32 to vector<8x512xi32>
    %49 = arith.cmpi slt, %7, %48 : vector<8x512xi32>
    %c1_i32_23 = arith.constant 1 : i32
    %50 = vector.broadcast %c1_i32_23 : i32 to vector<8x512xi32>
    %51 = arith.cmpi sge, %9, %50 : vector<8x512xi32>
    %52 = arith.andi %49, %51 : vector<8x512xi1>
    %cst_24 = arith.constant 0.000000e+00 : f32
    %53 = vector.broadcast %cst_24 : f32 to vector<8x512xf32>
    %54 = arith.select %52, %47, %53 : vector<8x512xi1>, vector<8x512xf32>
    %c48 = arith.constant 48 : index
    %c0_25 = arith.constant 0 : index
    %55 = vector.load %arg12[%c48, %c0_25] : memref<72x512xf32, #tpu.memory_space<vmem>>, vector<8x512xf32>
    tpu.vector_store %arg12[%c48, %c0_25], %54 {strides = array<i32>} : memref<72x512xf32, #tpu.memory_space<vmem>>, vector<8x512xf32>,
    %c496_i32 = arith.constant 496 : i32
    %56 = tpu.dynamic_rotate %2 by %c496_i32 dim 1 : vector<8x512xf32>, i32 -> vector<8x512xf32>
    %c15_i32_26 = arith.constant 15 : i32
    %57 = vector.broadcast %c15_i32_26 : i32 to vector<8x512xi32>
    %58 = arith.cmpi slt, %7, %57 : vector<8x512xi32>
    %cst_27 = arith.constant 0.000000e+00 : f32
    %59 = vector.broadcast %cst_27 : f32 to vector<8x512xf32>
    %60 = arith.select %58, %56, %59 : vector<8x512xi1>, vector<8x512xf32>
    %c56 = arith.constant 56 : index
    %c0_28 = arith.constant 0 : index
    %61 = vector.load %arg12[%c56, %c0_28] : memref<72x512xf32, #tpu.memory_space<vmem>>, vector<8x512xf32>
    tpu.vector_store %arg12[%c56, %c0_28], %60 {strides = array<i32>} : memref<72x512xf32, #tpu.memory_space<vmem>>, vector<8x512xf32>,
    %c495_i32 = arith.constant 495 : i32
    %62 = tpu.dynamic_rotate %2 by %c495_i32 dim 1 : vector<8x512xf32>, i32 -> vector<8x512xf32>
    %c15_i32_29 = arith.constant 15 : i32
    %63 = vector.broadcast %c15_i32_29 : i32 to vector<8x512xi32>
    %64 = arith.cmpi slt, %7, %63 : vector<8x512xi32>
    %c15_i32_30 = arith.constant 15 : i32
    %65 = vector.broadcast %c15_i32_30 : i32 to vector<8x512xi32>
    %66 = arith.cmpi slt, %9, %65 : vector<8x512xi32>
    %67 = arith.andi %64, %66 : vector<8x512xi1>
    %cst_31 = arith.constant 0.000000e+00 : f32
    %68 = vector.broadcast %cst_31 : f32 to vector<8x512xf32>
    %69 = arith.select %67, %62, %68 : vector<8x512xi1>, vector<8x512xf32>
    %c64 = arith.constant 64 : index
    %c0_32 = arith.constant 0 : index
    %70 = vector.load %arg12[%c64, %c0_32] : memref<72x512xf32, #tpu.memory_space<vmem>>, vector<8x512xf32>
    tpu.vector_store %arg12[%c64, %c0_32], %69 {strides = array<i32>} : memref<72x512xf32, #tpu.memory_space<vmem>>, vector<8x512xf32>,
    %c0_33 = arith.constant 0 : index
    %c0_34 = arith.constant 0 : index
    %71 = vector.load %arg1[%c0_33, %c0_34] : memref<8x8xf32, #tpu.memory_space<vmem>>, vector<8x8xf32>
    %c0_35 = arith.constant 0 : index
    %c0_36 = arith.constant 0 : index
    %72 = vector.load %arg3[%c0_35, %c0_36] : memref<1x8xf32, #tpu.memory_space<vmem>>, vector<1x8xf32>
    %cst_37 = arith.constant dense<0.000000e+00> : vector<1x8xf32>
    %73 = tpu.matmul %72, %71, %cst_37 {dimension_numbers = #tpu.dot_dimension_numbers<[1], [0], [0], [1], [0, 0, 1, 1], [], []>} : vector<1x8xf32>, vector<8x8xf32>, vector<1x8xf32> -> vector<1x8xf32>
    %74 = arith.mulf %73, %73 : vector<1x8xf32>
    %75 = vector.shape_cast %74 : vector<1x8xf32> to vector<1x1x8xf32>
    %cst_38 = arith.constant dense<0.000000e+00> : vector<1xf32>
    %76 = vector.multi_reduction <add>, %75, %cst_38 [1, 2] : vector<1x1x8xf32> to vector<1xf32>
    %77 = vector.shape_cast %76 : vector<1xf32> to vector<1x1x1xf32>
    %78 = vector.extract %77[0, 0, 0] : f32 from vector<1x1x1xf32>
    %79 = math.sqrt %78 : f32
    %cst_39 = arith.constant 9.99999996E-13 : f32
    %80 = arith.addf %79, %cst_39 : f32
    %81 = vector.broadcast %80 : f32 to vector<1x8xf32>
    %82 = arith.divf %73, %81 : vector<1x8xf32>
    %cst_40 = arith.constant dense<0.000000e+00> : vector<1x8xf32>
    %83 = tpu.matmul %82, %71, %cst_40 {dimension_numbers = #tpu.dot_dimension_numbers<[1], [1], [0], [0], [0, 0, 1, 0], [], []>} : vector<1x8xf32>, vector<8x8xf32>, vector<1x8xf32> -> vector<1x8xf32>
    %84 = arith.mulf %83, %83 : vector<1x8xf32>
    %85 = vector.shape_cast %84 : vector<1x8xf32> to vector<1x1x8xf32>
    %cst_41 = arith.constant dense<0.000000e+00> : vector<1xf32>
    %86 = vector.multi_reduction <add>, %85, %cst_41 [1, 2] : vector<1x1x8xf32> to vector<1xf32>
    %87 = vector.shape_cast %86 : vector<1xf32> to vector<1x1x1xf32>
    %88 = vector.extract %87[0, 0, 0] : f32 from vector<1x1x1xf32>
    %89 = math.sqrt %88 : f32
    %cst_42 = arith.constant 9.99999996E-13 : f32
    %90 = arith.addf %89, %cst_42 : f32
    %91 = vector.broadcast %90 : f32 to vector<1x8xf32>
    %92 = arith.divf %83, %91 : vector<1x8xf32>
    %cst_43 = arith.constant dense<0.000000e+00> : vector<1x8xf32>
    %93 = tpu.matmul %82, %71, %cst_43 {dimension_numbers = #tpu.dot_dimension_numbers<[1], [1], [0], [0], [0, 0, 1, 0], [], []>} : vector<1x8xf32>, vector<8x8xf32>, vector<1x8xf32> -> vector<1x8xf32>
    %94 = arith.mulf %92, %93 : vector<1x8xf32>
    %95 = vector.shape_cast %94 : vector<1x8xf32> to vector<1x1x8xf32>
    %cst_44 = arith.constant dense<0.000000e+00> : vector<1xf32>
    %96 = vector.multi_reduction <add>, %95, %cst_44 [1, 2] : vector<1x1x8xf32> to vector<1xf32>
    %97 = vector.shape_cast %96 : vector<1xf32> to vector<1x1x1xf32>
    %98 = vector.extract %97[0, 0, 0] : f32 from vector<1x1x1xf32>
    %cst_45 = arith.constant 1.000000e+00 : f32
    %99 = arith.divf %cst_45, %98 : f32
    %c0_46 = arith.constant 0 : index
    %c0_47 = arith.constant 0 : index
    %100 = vector.load %arg4[%c0_46, %c0_47] : memref<8x72xf32, #tpu.memory_space<vmem>>, vector<8x72xf32>
    %c0_48 = arith.constant 0 : index
    %c0_49 = arith.constant 0 : index
    %101 = vector.load %arg6[%c0_48, %c0_49] : memref<1x8xf32, #tpu.memory_space<vmem>>, vector<1x8xf32>
    %cst_50 = arith.constant dense<0.000000e+00> : vector<1x72xf32>
    %102 = tpu.matmul %101, %100, %cst_50 {dimension_numbers = #tpu.dot_dimension_numbers<[1], [0], [0], [1], [0, 0, 1, 1], [], []>} : vector<1x8xf32>, vector<8x72xf32>, vector<1x72xf32> -> vector<1x72xf32>
    %103 = arith.mulf %102, %102 : vector<1x72xf32>
    %104 = vector.shape_cast %103 : vector<1x72xf32> to vector<1x1x72xf32>
    %cst_51 = arith.constant dense<0.000000e+00> : vector<1xf32>
    %105 = vector.multi_reduction <add>, %104, %cst_51 [1, 2] : vector<1x1x72xf32> to vector<1xf32>
    %106 = vector.shape_cast %105 : vector<1xf32> to vector<1x1x1xf32>
    %107 = vector.extract %106[0, 0, 0] : f32 from vector<1x1x1xf32>
    %108 = math.sqrt %107 : f32
    %cst_52 = arith.constant 9.99999996E-13 : f32
    %109 = arith.addf %108, %cst_52 : f32
    %110 = vector.broadcast %109 : f32 to vector<1x72xf32>
    %111 = arith.divf %102, %110 : vector<1x72xf32>
    %cst_53 = arith.constant dense<0.000000e+00> : vector<1x8xf32>
    %112 = tpu.matmul %111, %100, %cst_53 {dimension_numbers = #tpu.dot_dimension_numbers<[1], [1], [0], [0], [0, 0, 1, 0], [], []>} : vector<1x72xf32>, vector<8x72xf32>, vector<1x8xf32> -> vector<1x8xf32>
    %113 = arith.mulf %112, %112 : vector<1x8xf32>
    %114 = vector.shape_cast %113 : vector<1x8xf32> to vector<1x1x8xf32>
    %cst_54 = arith.constant dense<0.000000e+00> : vector<1xf32>
    %115 = vector.multi_reduction <add>, %114, %cst_54 [1, 2] : vector<1x1x8xf32> to vector<1xf32>
    %116 = vector.shape_cast %115 : vector<1xf32> to vector<1x1x1xf32>
    %117 = vector.extract %116[0, 0, 0] : f32 from vector<1x1x1xf32>
    %118 = math.sqrt %117 : f32
    %cst_55 = arith.constant 9.99999996E-13 : f32
    %119 = arith.addf %118, %cst_55 : f32
    %120 = vector.broadcast %119 : f32 to vector<1x8xf32>
    %121 = arith.divf %112, %120 : vector<1x8xf32>
    %cst_56 = arith.constant dense<0.000000e+00> : vector<1x8xf32>
    %122 = tpu.matmul %111, %100, %cst_56 {dimension_numbers = #tpu.dot_dimension_numbers<[1], [1], [0], [0], [0, 0, 1, 0], [], []>} : vector<1x72xf32>, vector<8x72xf32>, vector<1x8xf32> -> vector<1x8xf32>
    %123 = arith.mulf %121, %122 : vector<1x8xf32>
    %124 = vector.shape_cast %123 : vector<1x8xf32> to vector<1x1x8xf32>
    %cst_57 = arith.constant dense<0.000000e+00> : vector<1xf32>
    %125 = vector.multi_reduction <add>, %124, %cst_57 [1, 2] : vector<1x1x8xf32> to vector<1xf32>
    %126 = vector.shape_cast %125 : vector<1xf32> to vector<1x1x1xf32>
    %127 = vector.extract %126[0, 0, 0] : f32 from vector<1x1x1xf32>
    %cst_58 = arith.constant 1.000000e+00 : f32
    %128 = arith.divf %cst_58, %127 : f32
    %c0_59 = arith.constant 0 : index
    %c0_60 = arith.constant 0 : index
    %129 = vector.load %arg7[%c0_59, %c0_60] : memref<8x72xf32, #tpu.memory_space<vmem>>, vector<8x72xf32>
    %c0_61 = arith.constant 0 : index
    %c0_62 = arith.constant 0 : index
    %130 = vector.load %arg9[%c0_61, %c0_62] : memref<1x8xf32, #tpu.memory_space<vmem>>, vector<1x8xf32>
    %cst_63 = arith.constant dense<0.000000e+00> : vector<1x72xf32>
    %131 = tpu.matmul %130, %129, %cst_63 {dimension_numbers = #tpu.dot_dimension_numbers<[1], [0], [0], [1], [0, 0, 1, 1], [], []>} : vector<1x8xf32>, vector<8x72xf32>, vector<1x72xf32> -> vector<1x72xf32>
    %132 = arith.mulf %131, %131 : vector<1x72xf32>
    %133 = vector.shape_cast %132 : vector<1x72xf32> to vector<1x1x72xf32>
    %cst_64 = arith.constant dense<0.000000e+00> : vector<1xf32>
    %134 = vector.multi_reduction <add>, %133, %cst_64 [1, 2] : vector<1x1x72xf32> to vector<1xf32>
    %135 = vector.shape_cast %134 : vector<1xf32> to vector<1x1x1xf32>
    %136 = vector.extract %135[0, 0, 0] : f32 from vector<1x1x1xf32>
    %137 = math.sqrt %136 : f32
    %cst_65 = arith.constant 9.99999996E-13 : f32
    %138 = arith.addf %137, %cst_65 : f32
    %139 = vector.broadcast %138 : f32 to vector<1x72xf32>
    %140 = arith.divf %131, %139 : vector<1x72xf32>
    %cst_66 = arith.constant dense<0.000000e+00> : vector<1x8xf32>
    %141 = tpu.matmul %140, %129, %cst_66 {dimension_numbers = #tpu.dot_dimension_numbers<[1], [1], [0], [0], [0, 0, 1, 0], [], []>} : vector<1x72xf32>, vector<8x72xf32>, vector<1x8xf32> -> vector<1x8xf32>
    %142 = arith.mulf %141, %141 : vector<1x8xf32>
    %143 = vector.shape_cast %142 : vector<1x8xf32> to vector<1x1x8xf32>
    %cst_67 = arith.constant dense<0.000000e+00> : vector<1xf32>
    %144 = vector.multi_reduction <add>, %143, %cst_67 [1, 2] : vector<1x1x8xf32> to vector<1xf32>
    %145 = vector.shape_cast %144 : vector<1xf32> to vector<1x1x1xf32>
    %146 = vector.extract %145[0, 0, 0] : f32 from vector<1x1x1xf32>
    %147 = math.sqrt %146 : f32
    %cst_68 = arith.constant 9.99999996E-13 : f32
    %148 = arith.addf %147, %cst_68 : f32
    %149 = vector.broadcast %148 : f32 to vector<1x8xf32>
    %150 = arith.divf %141, %149 : vector<1x8xf32>
    %cst_69 = arith.constant dense<0.000000e+00> : vector<1x8xf32>
    %151 = tpu.matmul %140, %129, %cst_69 {dimension_numbers = #tpu.dot_dimension_numbers<[1], [1], [0], [0], [0, 0, 1, 0], [], []>} : vector<1x72xf32>, vector<8x72xf32>, vector<1x8xf32> -> vector<1x8xf32>
    %152 = arith.mulf %150, %151 : vector<1x8xf32>
    %153 = vector.shape_cast %152 : vector<1x8xf32> to vector<1x1x8xf32>
    %cst_70 = arith.constant dense<0.000000e+00> : vector<1xf32>
    %154 = vector.multi_reduction <add>, %153, %cst_70 [1, 2] : vector<1x1x8xf32> to vector<1xf32>
    %155 = vector.shape_cast %154 : vector<1xf32> to vector<1x1x1xf32>
    %156 = vector.extract %155[0, 0, 0] : f32 from vector<1x1x1xf32>
    %cst_71 = arith.constant 1.000000e+00 : f32
    %157 = arith.divf %cst_71, %156 : f32
    %cst_72 = arith.constant 0.000000e+00 : f32
    %158 = vector.broadcast %cst_72 : f32 to vector<8x128xf32>
    %c0_73 = arith.constant 0 : index
    %c0_74 = arith.constant 0 : index
    %159 = vector.load %arg11[%c0_73, %c0_74] : memref<8x128xf32, #tpu.memory_space<vmem>>, vector<8x128xf32>
    tpu.vector_store %arg11[%c0_73, %c0_74], %158 {strides = array<i32>} : memref<8x128xf32, #tpu.memory_space<vmem>>, vector<8x128xf32>,
    %c0_75 = arith.constant 0 : index
    %c0_76 = arith.constant 0 : index
    %160 = vector.load %arg11[%c0_75, %c0_76] : memref<8x128xf32, #tpu.memory_space<vmem>>, vector<1x8xf32>
    tpu.vector_store %arg11[%c0_75, %c0_76], %92 {strides = array<i32>} : memref<8x128xf32, #tpu.memory_space<vmem>>, vector<1x8xf32>,
    %c1 = arith.constant 1 : index
    %c0_77 = arith.constant 0 : index
    %161 = vector.load %arg11[%c1, %c0_77] : memref<8x128xf32, #tpu.memory_space<vmem>>, vector<1x8xf32>
    tpu.vector_store %arg11[%c1, %c0_77], %82 {strides = array<i32>} : memref<8x128xf32, #tpu.memory_space<vmem>>, vector<1x8xf32>,
    %c2 = arith.constant 2 : index
    %c0_78 = arith.constant 0 : index
    %162 = vector.load %arg11[%c2, %c0_78] : memref<8x128xf32, #tpu.memory_space<vmem>>, vector<1x8xf32>
    tpu.vector_store %arg11[%c2, %c0_78], %121 {strides = array<i32>} : memref<8x128xf32, #tpu.memory_space<vmem>>, vector<1x8xf32>,
    %c3 = arith.constant 3 : index
    %c0_79 = arith.constant 0 : index
    %163 = vector.load %arg11[%c3, %c0_79] : memref<8x128xf32, #tpu.memory_space<vmem>>, vector<1x72xf32>
    tpu.vector_store %arg11[%c3, %c0_79], %111 {strides = array<i32>} : memref<8x128xf32, #tpu.memory_space<vmem>>, vector<1x72xf32>,
    %c4 = arith.constant 4 : index
    %c0_80 = arith.constant 0 : index
    %164 = vector.load %arg11[%c4, %c0_80] : memref<8x128xf32, #tpu.memory_space<vmem>>, vector<1x8xf32>
    tpu.vector_store %arg11[%c4, %c0_80], %150 {strides = array<i32>} : memref<8x128xf32, #tpu.memory_space<vmem>>, vector<1x8xf32>,
    %c5 = arith.constant 5 : index
    %c0_81 = arith.constant 0 : index
    %165 = vector.load %arg11[%c5, %c0_81] : memref<8x128xf32, #tpu.memory_space<vmem>>, vector<1x72xf32>
    tpu.vector_store %arg11[%c5, %c0_81], %140 {strides = array<i32>} : memref<8x128xf32, #tpu.memory_space<vmem>>, vector<1x72xf32>,
    %c0_82 = arith.constant 0 : index
    %c0_83 = arith.constant 0 : index
    %166 = vector.load %arg1[%c0_82, %c0_83] : memref<8x8xf32, #tpu.memory_space<vmem>>, vector<8x8xf32>
    %cst_84 = arith.constant dense<0.000000e+00> : vector<8x512xf32>
    %167 = tpu.matmul %166, %2, %cst_84 {dimension_numbers = #tpu.dot_dimension_numbers<[1], [0], [0], [1], [0, 0, 1, 1], [], []>} : vector<8x8xf32>, vector<8x512xf32>, vector<8x512xf32> -> vector<8x512xf32>
    %168 = vector.broadcast %99 : f32 to vector<8x512xf32>
    %169 = arith.mulf %167, %168 : vector<8x512xf32>
    %c0_85 = arith.constant 0 : index
    %c0_86 = arith.constant 0 : index
    %170 = vector.load %arg2[%c0_85, %c0_86] : memref<8x1xf32, #tpu.memory_space<vmem>>, vector<8x1xf32>
    %171 = vector.broadcast %170 : vector<8x1xf32> to vector<8x512xf32>
    %172 = arith.addf %169, %171 : vector<8x512xf32>
    %c0_87 = arith.constant 0 : index
    %c0_88 = arith.constant 0 : index
    %173 = vector.load %arg4[%c0_87, %c0_88] : memref<8x72xf32, #tpu.memory_space<vmem>>, vector<8x72xf32>
    %c0_89 = arith.constant 0 : index
    %c0_90 = arith.constant 0 : index
    %174 = vector.load %arg12[%c0_89, %c0_90] : memref<72x512xf32, #tpu.memory_space<vmem>>, vector<72x512xf32>
    %cst_91 = arith.constant dense<0.000000e+00> : vector<8x512xf32>
    %175 = tpu.matmul %173, %174, %cst_91 {dimension_numbers = #tpu.dot_dimension_numbers<[1], [0], [0], [1], [0, 0, 1, 1], [], []>} : vector<8x72xf32>, vector<72x512xf32>, vector<8x512xf32> -> vector<8x512xf32>
    %176 = vector.broadcast %128 : f32 to vector<8x512xf32>
    %177 = arith.mulf %175, %176 : vector<8x512xf32>
    %c0_92 = arith.constant 0 : index
    %c0_93 = arith.constant 0 : index
    %178 = vector.load %arg5[%c0_92, %c0_93] : memref<8x1xf32, #tpu.memory_space<vmem>>, vector<8x1xf32>
    %179 = vector.broadcast %178 : vector<8x1xf32> to vector<8x512xf32>
    %180 = arith.addf %177, %179 : vector<8x512xf32>
    %cst_94 = arith.constant 0.000000e+00 : f32
    %181 = vector.broadcast %cst_94 : f32 to vector<8x512xf32>
    %182 = arith.maximumf %180, %181 : vector<8x512xf32>
    %c17_i32_95 = arith.constant 17 : i32
    %183 = tpu.dynamic_rotate %182 by %c17_i32_95 dim 1 : vector<8x512xf32>, i32 -> vector<8x512xf32>
    %c1_i32_96 = arith.constant 1 : i32
    %184 = vector.broadcast %c1_i32_96 : i32 to vector<8x512xi32>
    %185 = arith.cmpi sge, %7, %184 : vector<8x512xi32>
    %c1_i32_97 = arith.constant 1 : i32
    %186 = vector.broadcast %c1_i32_97 : i32 to vector<8x512xi32>
    %187 = arith.cmpi sge, %9, %186 : vector<8x512xi32>
    %188 = arith.andi %185, %187 : vector<8x512xi1>
    %cst_98 = arith.constant 0.000000e+00 : f32
    %189 = vector.broadcast %cst_98 : f32 to vector<8x512xf32>
    %190 = arith.select %188, %183, %189 : vector<8x512xi1>, vector<8x512xf32>
    %c0_99 = arith.constant 0 : index
    %c0_100 = arith.constant 0 : index
    %191 = vector.load %arg12[%c0_99, %c0_100] : memref<72x512xf32, #tpu.memory_space<vmem>>, vector<8x512xf32>
    tpu.vector_store %arg12[%c0_99, %c0_100], %190 {strides = array<i32>} : memref<72x512xf32, #tpu.memory_space<vmem>>, vector<8x512xf32>,
    %c16_i32_101 = arith.constant 16 : i32
    %192 = tpu.dynamic_rotate %182 by %c16_i32_101 dim 1 : vector<8x512xf32>, i32 -> vector<8x512xf32>
    %c1_i32_102 = arith.constant 1 : i32
    %193 = vector.broadcast %c1_i32_102 : i32 to vector<8x512xi32>
    %194 = arith.cmpi sge, %7, %193 : vector<8x512xi32>
    %cst_103 = arith.constant 0.000000e+00 : f32
    %195 = vector.broadcast %cst_103 : f32 to vector<8x512xf32>
    %196 = arith.select %194, %192, %195 : vector<8x512xi1>, vector<8x512xf32>
    %c8_104 = arith.constant 8 : index
    %c0_105 = arith.constant 0 : index
    %197 = vector.load %arg12[%c8_104, %c0_105] : memref<72x512xf32, #tpu.memory_space<vmem>>, vector<8x512xf32>
    tpu.vector_store %arg12[%c8_104, %c0_105], %196 {strides = array<i32>} : memref<72x512xf32, #tpu.memory_space<vmem>>, vector<8x512xf32>,
    %c15_i32_106 = arith.constant 15 : i32
    %198 = tpu.dynamic_rotate %182 by %c15_i32_106 dim 1 : vector<8x512xf32>, i32 -> vector<8x512xf32>
    %c1_i32_107 = arith.constant 1 : i32
    %199 = vector.broadcast %c1_i32_107 : i32 to vector<8x512xi32>
    %200 = arith.cmpi sge, %7, %199 : vector<8x512xi32>
    %c15_i32_108 = arith.constant 15 : i32
    %201 = vector.broadcast %c15_i32_108 : i32 to vector<8x512xi32>
    %202 = arith.cmpi slt, %9, %201 : vector<8x512xi32>
    %203 = arith.andi %200, %202 : vector<8x512xi1>
    %cst_109 = arith.constant 0.000000e+00 : f32
    %204 = vector.broadcast %cst_109 : f32 to vector<8x512xf32>
    %205 = arith.select %203, %198, %204 : vector<8x512xi1>, vector<8x512xf32>
    %c16_110 = arith.constant 16 : index
    %c0_111 = arith.constant 0 : index
    %206 = vector.load %arg12[%c16_110, %c0_111] : memref<72x512xf32, #tpu.memory_space<vmem>>, vector<8x512xf32>
    tpu.vector_store %arg12[%c16_110, %c0_111], %205 {strides = array<i32>} : memref<72x512xf32, #tpu.memory_space<vmem>>, vector<8x512xf32>,
    %c1_i32_112 = arith.constant 1 : i32
    %207 = tpu.dynamic_rotate %182 by %c1_i32_112 dim 1 : vector<8x512xf32>, i32 -> vector<8x512xf32>
    %c1_i32_113 = arith.constant 1 : i32
    %208 = vector.broadcast %c1_i32_113 : i32 to vector<8x512xi32>
    %209 = arith.cmpi sge, %9, %208 : vector<8x512xi32>
    %cst_114 = arith.constant 0.000000e+00 : f32
    %210 = vector.broadcast %cst_114 : f32 to vector<8x512xf32>
    %211 = arith.select %209, %207, %210 : vector<8x512xi1>, vector<8x512xf32>
    %c24_115 = arith.constant 24 : index
    %c0_116 = arith.constant 0 : index
    %212 = vector.load %arg12[%c24_115, %c0_116] : memref<72x512xf32, #tpu.memory_space<vmem>>, vector<8x512xf32>
    tpu.vector_store %arg12[%c24_115, %c0_116], %211 {strides = array<i32>} : memref<72x512xf32, #tpu.memory_space<vmem>>, vector<8x512xf32>,
    %c32_117 = arith.constant 32 : index
    %c0_118 = arith.constant 0 : index
    %213 = vector.load %arg12[%c32_117, %c0_118] : memref<72x512xf32, #tpu.memory_space<vmem>>, vector<8x512xf32>
    tpu.vector_store %arg12[%c32_117, %c0_118], %182 {strides = array<i32>} : memref<72x512xf32, #tpu.memory_space<vmem>>, vector<8x512xf32>,
    %c511_i32_119 = arith.constant 511 : i32
    %214 = tpu.dynamic_rotate %182 by %c511_i32_119 dim 1 : vector<8x512xf32>, i32 -> vector<8x512xf32>
    %c15_i32_120 = arith.constant 15 : i32
    %215 = vector.broadcast %c15_i32_120 : i32 to vector<8x512xi32>
    %216 = arith.cmpi slt, %9, %215 : vector<8x512xi32>
    %cst_121 = arith.constant 0.000000e+00 : f32
    %217 = vector.broadcast %cst_121 : f32 to vector<8x512xf32>
    %218 = arith.select %216, %214, %217 : vector<8x512xi1>, vector<8x512xf32>
    %c40_122 = arith.constant 40 : index
    %c0_123 = arith.constant 0 : index
    %219 = vector.load %arg12[%c40_122, %c0_123] : memref<72x512xf32, #tpu.memory_space<vmem>>, vector<8x512xf32>
    tpu.vector_store %arg12[%c40_122, %c0_123], %218 {strides = array<i32>} : memref<72x512xf32, #tpu.memory_space<vmem>>, vector<8x512xf32>,
    %c497_i32_124 = arith.constant 497 : i32
    %220 = tpu.dynamic_rotate %182 by %c497_i32_124 dim 1 : vector<8x512xf32>, i32 -> vector<8x512xf32>
    %c15_i32_125 = arith.constant 15 : i32
    %221 = vector.broadcast %c15_i32_125 : i32 to vector<8x512xi32>
    %222 = arith.cmpi slt, %7, %221 : vector<8x512xi32>
    %c1_i32_126 = arith.constant 1 : i32
    %223 = vector.broadcast %c1_i32_126 : i32 to vector<8x512xi32>
    %224 = arith.cmpi sge, %9, %223 : vector<8x512xi32>
    %225 = arith.andi %222, %224 : vector<8x512xi1>
    %cst_127 = arith.constant 0.000000e+00 : f32
    %226 = vector.broadcast %cst_127 : f32 to vector<8x512xf32>
    %227 = arith.select %225, %220, %226 : vector<8x512xi1>, vector<8x512xf32>
    %c48_128 = arith.constant 48 : index
    %c0_129 = arith.constant 0 : index
    %228 = vector.load %arg12[%c48_128, %c0_129] : memref<72x512xf32, #tpu.memory_space<vmem>>, vector<8x512xf32>
    tpu.vector_store %arg12[%c48_128, %c0_129], %227 {strides = array<i32>} : memref<72x512xf32, #tpu.memory_space<vmem>>, vector<8x512xf32>,
    %c496_i32_130 = arith.constant 496 : i32
    %229 = tpu.dynamic_rotate %182 by %c496_i32_130 dim 1 : vector<8x512xf32>, i32 -> vector<8x512xf32>
    %c15_i32_131 = arith.constant 15 : i32
    %230 = vector.broadcast %c15_i32_131 : i32 to vector<8x512xi32>
    %231 = arith.cmpi slt, %7, %230 : vector<8x512xi32>
    %cst_132 = arith.constant 0.000000e+00 : f32
    %232 = vector.broadcast %cst_132 : f32 to vector<8x512xf32>
    %233 = arith.select %231, %229, %232 : vector<8x512xi1>, vector<8x512xf32>
    %c56_133 = arith.constant 56 : index
    %c0_134 = arith.constant 0 : index
    %234 = vector.load %arg12[%c56_133, %c0_134] : memref<72x512xf32, #tpu.memory_space<vmem>>, vector<8x512xf32>
    tpu.vector_store %arg12[%c56_133, %c0_134], %233 {strides = array<i32>} : memref<72x512xf32, #tpu.memory_space<vmem>>, vector<8x512xf32>,
    %c495_i32_135 = arith.constant 495 : i32
    %235 = tpu.dynamic_rotate %182 by %c495_i32_135 dim 1 : vector<8x512xf32>, i32 -> vector<8x512xf32>
    %c15_i32_136 = arith.constant 15 : i32
    %236 = vector.broadcast %c15_i32_136 : i32 to vector<8x512xi32>
    %237 = arith.cmpi slt, %7, %236 : vector<8x512xi32>
    %c15_i32_137 = arith.constant 15 : i32
    %238 = vector.broadcast %c15_i32_137 : i32 to vector<8x512xi32>
    %239 = arith.cmpi slt, %9, %238 : vector<8x512xi32>
    %240 = arith.andi %237, %239 : vector<8x512xi1>
    %cst_138 = arith.constant 0.000000e+00 : f32
    %241 = vector.broadcast %cst_138 : f32 to vector<8x512xf32>
    %242 = arith.select %240, %235, %241 : vector<8x512xi1>, vector<8x512xf32>
    %c64_139 = arith.constant 64 : index
    %c0_140 = arith.constant 0 : index
    %243 = vector.load %arg12[%c64_139, %c0_140] : memref<72x512xf32, #tpu.memory_space<vmem>>, vector<8x512xf32>
    tpu.vector_store %arg12[%c64_139, %c0_140], %242 {strides = array<i32>} : memref<72x512xf32, #tpu.memory_space<vmem>>, vector<8x512xf32>,
    %c0_141 = arith.constant 0 : index
    %c0_142 = arith.constant 0 : index
    %244 = vector.load %arg7[%c0_141, %c0_142] : memref<8x72xf32, #tpu.memory_space<vmem>>, vector<8x72xf32>
    %c0_143 = arith.constant 0 : index
    %c0_144 = arith.constant 0 : index
    %245 = vector.load %arg12[%c0_143, %c0_144] : memref<72x512xf32, #tpu.memory_space<vmem>>, vector<72x512xf32>
    %cst_145 = arith.constant dense<0.000000e+00> : vector<8x512xf32>
    %246 = tpu.matmul %244, %245, %cst_145 {dimension_numbers = #tpu.dot_dimension_numbers<[1], [0], [0], [1], [0, 0, 1, 1], [], []>} : vector<8x72xf32>, vector<72x512xf32>, vector<8x512xf32> -> vector<8x512xf32>
    %247 = vector.broadcast %157 : f32 to vector<8x512xf32>
    %248 = arith.mulf %246, %247 : vector<8x512xf32>
    %c0_146 = arith.constant 0 : index
    %c0_147 = arith.constant 0 : index
    %249 = vector.load %arg8[%c0_146, %c0_147] : memref<8x1xf32, #tpu.memory_space<vmem>>, vector<8x1xf32>
    %250 = vector.broadcast %249 : vector<8x1xf32> to vector<8x512xf32>
    %251 = arith.addf %248, %250 : vector<8x512xf32>
    %252 = arith.addf %172, %251 : vector<8x512xf32>
    %253 = arith.addf %252, %2 : vector<8x512xf32>
    %254 = vector.extract_strided_slice %253 {offsets = [0, 0], sizes = [8, 256], strides = [1, 1]} : vector<8x512xf32> to vector<8x256xf32>
    %c0_148 = arith.constant 0 : index
    %c0_149 = arith.constant 0 : index
    %255 = vector.load %arg10[%c0_148, %c0_149] : memref<16x256xf32, #tpu.memory_space<vmem>>, vector<8x256xf32>
    tpu.vector_store %arg10[%c0_148, %c0_149], %254 {strides = array<i32>} : memref<16x256xf32, #tpu.memory_space<vmem>>, vector<8x256xf32>,
    %256 = vector.extract_strided_slice %253 {offsets = [0, 256], sizes = [8, 256], strides = [1, 1]} : vector<8x512xf32> to vector<8x256xf32>
    %c8_150 = arith.constant 8 : index
    %c0_151 = arith.constant 0 : index
    %257 = vector.load %arg10[%c8_150, %c0_151] : memref<16x256xf32, #tpu.memory_space<vmem>>, vector<8x256xf32>
    tpu.vector_store %arg10[%c8_150, %c0_151], %256 {strides = array<i32>} : memref<16x256xf32, #tpu.memory_space<vmem>>, vector<8x256xf32>,
    return
  }
}

</mosaic_0001>

<llo_original>
// kernel: squeeze.11
$region0: #{squeeze.11}
  %s0 = inlined_call_operand.vmem [shape: f32[72], index: 0, kind: input, shape index: {}]
  %s1 = inlined_call_operand.vmem [shape: f32[3,3,8], index: 1, kind: output, shape index: {}]
  $region1: #{squeeze.11} parent=0
    #allocation0 [shape = 'u8[12288]{0}', space=vmem, size = 0x3000, scoped, tag = 'scoped mem for output reshape']
    #allocation1 [shape = 'u8[4096]{0}', space=vmem, size = 0x1000, scoped, tag = 'scoped mem for input reshape']
    %s3 = ssub.s32 2, 1
    %v4 = vld [vmem:[%s0] sm:%s3]
    %5 = vst [vmem:[#allocation1] sm:%s3] %v4
    %v6 = vld [vmem:[#allocation1] sm:$0x1]
    %vm7 = vcmask 64512
    %8 = vst.msk [vmem:[#allocation0] sm:$0x1] %vm7, %v6
    %v9 = vld [vmem:[#allocation1] sm:$0x1]
    %10 = vrot.lane.b32.xlu0 %v9, 120
    %v11 = vpop.permute.xlu0 %10
    %vm12 = vcmask 64512
    %s13 = scalar_lea.vmem [#allocation0], 1
    %14 = vst.msk [vmem:[%s13] sm:$0x1] %vm12, %v11
    %v15 = vld [vmem:[#allocation1] sm:$0x1]
    %16 = vrot.lane.b32.xlu0 %v15, 112
    %v17 = vpop.permute.xlu0 %16
    %vm18 = vcmask 64512
    %s19 = scalar_lea.vmem [#allocation0], 2
    %20 = vst.msk [vmem:[%s19] sm:$0x1] %vm18, %v17
    %v21 = vld [vmem:[#allocation1] sm:$0x1]
    %22 = vrot.lane.b32.xlu0 %v21, 104
    %v23 = vpop.permute.xlu0 %22
    %vm24 = vcmask 64512
    %s25 = scalar_lea.vmem [#allocation0], 8
    %26 = vst.msk [vmem:[%s25] sm:$0x1] %vm24, %v23
    %v27 = vld [vmem:[#allocation1] sm:$0x1]
    %28 = vrot.lane.b32.xlu0 %v27, 96
    %v29 = vpop.permute.xlu0 %28
    %vm30 = vcmask 64512
    %s31 = scalar_lea.vmem [#allocation0], 9
    %32 = vst.msk [vmem:[%s31] sm:$0x1] %vm30, %v29
    %v33 = vld [vmem:[#allocation1] sm:$0x1]
    %34 = vrot.lane.b32.xlu0 %v33, 88
    %v35 = vpop.permute.xlu0 %34
    %vm36 = vcmask 64512
    %s37 = scalar_lea.vmem [#allocation0], 10
    %38 = vst.msk [vmem:[%s37] sm:$0x1] %vm36, %v35
    %v39 = vld [vmem:[#allocation1] sm:$0x1]
    %40 = vrot.lane.b32.xlu0 %v39, 80
    %v41 = vpop.permute.xlu0 %40
    %vm42 = vcmask 64512
    %s43 = scalar_lea.vmem [#allocation0], 16
    %44 = vst.msk [vmem:[%s43] sm:$0x1] %vm42, %v41
    %v45 = vld [vmem:[#allocation1] sm:$0x1]
    %46 = vrot.lane.b32.xlu0 %v45, 72
    %v47 = vpop.permute.xlu0 %46
    %vm48 = vcmask 64512
    %s49 = scalar_lea.vmem [#allocation0], 17
    %50 = vst.msk [vmem:[%s49] sm:$0x1] %vm48, %v47
    %v51 = vld [vmem:[#allocation1] sm:$0x1]
    %52 = vrot.lane.b32.xlu0 %v51, 64
    %v53 = vpop.permute.xlu0 %52
    %vm54 = vcmask 64512
    %s55 = scalar_lea.vmem [#allocation0], 18
    %56 = vst.msk [vmem:[%s55] sm:$0x1] %vm54, %v53
    %s58 = ssub.s32 16, 1
    %v59 = vld [vmem:[#allocation0] sm:%s58]
    %s61 = ssub.s32 16, 1
    %62 = vst [vmem:[%s1] sm:%s61] %v59
    %s63 = scalar_lea.vmem [#allocation0], 8
    %v64 = vld [vmem:[%s63] sm:%s58]
    %s66 = ssub.s32 16, 1
    %s67 = scalar_lea.vmem %s1, 4
    %68 = vst [vmem:[%s67] sm:%s66] %v64
    %s69 = scalar_lea.vmem [#allocation0], 16
    %v70 = vld [vmem:[%s69] sm:%s58]
    %s72 = ssub.s32 16, 1
    %s73 = scalar_lea.vmem %s1, 8
    %74 = vst [vmem:[%s73] sm:%s72] %v70

// kernel: projblock_forward.1
$region0: #{projblock_forward.1}
  #allocation0 [shape = 'u32[]', space=smem, size = 0x4, offset = 0x4, fixed_abs, tag = 'smem constant byte address 0x4 - core index']
  #allocation1 [shape = 'u32[72,128]{1,0:T(1,128)}', space=vmem, size = 0x9000, scoped, tag = 'internal scratch']
  #allocation2 [shape = 'f32[72,512]{1,0:T(8,128)}', space=vmem, size = 0x24000, scoped, tag = 'scratch operand']
  %s0 = inlined_call_operand.vmem [shape: f32[16,256], index: 0, kind: input, shape index: {}]
  %s1 = inlined_call_operand.vmem [shape: f32[8,8], index: 1, kind: input, shape index: {}]
  %s2 = inlined_call_operand.vmem [shape: f32[8,1], index: 2, kind: input, shape index: {}]
  %s3 = inlined_call_operand.vmem [shape: f32[1,8], index: 3, kind: input, shape index: {}]
  %s4 = inlined_call_operand.vmem [shape: f32[8,72], index: 4, kind: input, shape index: {}]
  %s5 = inlined_call_operand.vmem [shape: f32[8,1], index: 5, kind: input, shape index: {}]
  %s6 = inlined_call_operand.vmem [shape: f32[1,8], index: 6, kind: input, shape index: {}]
  %s7 = inlined_call_operand.vmem [shape: f32[8,72], index: 7, kind: input, shape index: {}]
  %s8 = inlined_call_operand.vmem [shape: f32[8,1], index: 8, kind: input, shape index: {}]
  %s9 = inlined_call_operand.vmem [shape: f32[1,8], index: 9, kind: input, shape index: {}]
  %s10 = inlined_call_operand.vmem [shape: f32[16,256], index: 10, kind: output, shape index: {0}]
  %s11 = inlined_call_operand.vmem [shape: f32[8,128], index: 11, kind: output, shape index: {1}]
  %12 = xla_tuple %s10, %s11
  %s13 = sld [smem:[#allocation0]]
  $region58: #{projblock_forward.1} parent=0
    _
  %s15 = ssub.s32 1, %s13
  %s16 = scalar_select 0, %s15, %s13
  // Predicated region
  $region2: #{projblock_forward.1} parent=0 // pred_check
    _
  $region3: #{projblock_forward.1} parent=0 // pred_check_branch
    %18 = sbr.rel (0) target = $region5
  $region4: #{projblock_forward.1} parent=0 // pred_region
    _
  $region5: #{projblock_forward.1} parent=0 // pred_fallthru
    _
  // Predicated region
  $region6: #{projblock_forward.1} parent=0 // pred_check
    _
  $region7: #{projblock_forward.1} parent=0 // pred_check_branch
    %20 = sbr.rel (0) target = $region9
  $region8: #{projblock_forward.1} parent=0 // pred_region
    _
  $region9: #{projblock_forward.1} parent=0 // pred_fallthru
    _
  // Predicated region
  $region10: #{projblock_forward.1} parent=0 // pred_check
    _
  $region11: #{projblock_forward.1} parent=0 // pred_check_branch
    %22 = sbr.rel (0) target = $region13
  $region12: #{projblock_forward.1} parent=0 // pred_region
    _
  $region13: #{projblock_forward.1} parent=0 // pred_fallthru
    _
  // Predicated region
  $region14: #{projblock_forward.1} parent=0 // pred_check
    _
  $region15: #{projblock_forward.1} parent=0 // pred_check_branch
    %24 = sbr.rel (0) target = $region17
  $region16: #{projblock_forward.1} parent=0 // pred_region
    _
  $region17: #{projblock_forward.1} parent=0 // pred_fallthru
    _
  // Predicated region
  $region18: #{projblock_forward.1} parent=0 // pred_check
    _
  $region19: #{projblock_forward.1} parent=0 // pred_check_branch
    %26 = sbr.rel (0) target = $region21
  $region20: #{projblock_forward.1} parent=0 // pred_region
    _
  $region21: #{projblock_forward.1} parent=0 // pred_fallthru
    _
  // Predicated region
  $region22: #{projblock_forward.1} parent=0 // pred_check
    _
  $region23: #{projblock_forward.1} parent=0 // pred_check_branch
    %28 = sbr.rel (0) target = $region25
  $region24: #{projblock_forward.1} parent=0 // pred_region
    _
  $region25: #{projblock_forward.1} parent=0 // pred_fallthru
    _
  // Predicated region
  $region26: #{projblock_forward.1} parent=0 // pred_check
    _
  $region27: #{projblock_forward.1} parent=0 // pred_check_branch
    %30 = sbr.rel (0) target = $region29
  $region28: #{projblock_forward.1} parent=0 // pred_region
    _
  $region29: #{projblock_forward.1} parent=0 // pred_fallthru
    _
  // Predicated region
  $region30: #{projblock_forward.1} parent=0 // pred_check
    _
  $region31: #{projblock_forward.1} parent=0 // pred_check_branch
    %32 = sbr.rel (0) target = $region33
  $region32: #{projblock_forward.1} parent=0 // pred_region
    _
  $region33: #{projblock_forward.1} parent=0 // pred_fallthru
    _
  // Predicated region
  $region34: #{projblock_forward.1} parent=0 // pred_check
    _
  $region35: #{projblock_forward.1} parent=0 // pred_check_branch
    %34 = sbr.rel (0) target = $region37
  $region36: #{projblock_forward.1} parent=0 // pred_region
    _
  $region37: #{projblock_forward.1} parent=0 // pred_fallthru
    _
  // Predicated region
  $region38: #{projblock_forward.1} parent=0 // pred_check
    _
  $region39: #{projblock_forward.1} parent=0 // pred_check_branch
    %36 = sbr.rel (0) target = $region41
  $region40: #{projblock_forward.1} parent=0 // pred_region
    _
  $region41: #{projblock_forward.1} parent=0 // pred_fallthru
    _
  %v37 = vld [vmem:[%s0] sm:$0xff]
  %v38 = vld [vmem:[%s0 + $0x8] sm:$0xff]
  %v39 = vld [vmem:[%s0 + $0x10] sm:$0xff]
  %v40 = vld [vmem:[%s0 + $0x18] sm:$0xff]
  %v41 = vlaneseq
  %v42 = vand.u32 %v41, 127
  %v43 = vadd.s32 %v42, 128
  %v44 = vadd.s32 %v42, 256
  %v45 = vadd.s32 %v42, 384
  %v46 = vand.u32 %v42, 255
  %v47 = vand.u32 %v43, 255
  %v48 = vand.u32 %v44, 255
  %v49 = vand.u32 %v45, 255
  %v50 = vshra.s32 %v46, 4
  %v51 = vshra.s32 %v47, 4
  %v52 = vshra.s32 %v48, 4
  %v53 = vshra.s32 %v49, 4
  %v54 = vand.u32 %v42, 15
  %v55 = vand.u32 %v43, 15
  %v56 = vand.u32 %v44, 15
  %v57 = vand.u32 %v45, 15
  %58 = vrot.lane.b32.xlu0 %v37, 17
  %v59 = vpop.permute.xlu0 %58
  %60 = vrot.lane.b32.xlu0 %v38, 17
  %v61 = vpop.permute.xlu0 %60
  %62 = vrot.lane.b32.xlu0 %v39, 17
  %v63 = vpop.permute.xlu0 %62
  %64 = vrot.lane.b32.xlu0 %v40, 17
  %v65 = vpop.permute.xlu0 %64
  %vm66 = vcmp.lt.s32.totalorder %v42, 17
  %v67 = vsel %vm66, %v63, %v65
  %v68 = vsel %vm66, %v61, %v63
  %v69 = vsel %vm66, %v59, %v61
  %v70 = vsel %vm66, %v65, %v59
  %vm71 = vcmp.ge.s32.totalorder %v50, 1
  %vm72 = vcmp.ge.s32.totalorder %v51, 1
  %vm73 = vcmp.ge.s32.totalorder %v52, 1
  %vm74 = vcmp.ge.s32.totalorder %v53, 1
  %vm75 = vcmp.ge.s32.totalorder %v54, 1
  %vm76 = vcmp.ge.s32.totalorder %v55, 1
  %vm77 = vcmp.ge.s32.totalorder %v56, 1
  %vm78 = vcmp.ge.s32.totalorder %v57, 1
  %vm79 = vmand %vm71, %vm75
  %vm80 = vmand %vm72, %vm76
  %vm81 = vmand %vm73, %vm77
  %vm82 = vmand %vm74, %vm78
  %v83 = vsel %vm79, %v70, 0.0
  %v84 = vsel %vm80, %v69, 0.0
  %v85 = vsel %vm81, %v68, 0.0
  %v86 = vsel %vm82, %v67, 0.0
  %87 = vst [vmem:[#allocation2] sm:$0xff] %v83
  %88 = vst [vmem:[#allocation2 + $0x8] sm:$0xff] %v84
  %89 = vst [vmem:[#allocation2 + $0x10] sm:$0xff] %v85
  %90 = vst [vmem:[#allocation2 + $0x18] sm:$0xff] %v86
  %91 = vrot.lane.b32.xlu0 %v37, 16
  %v92 = vpop.permute.xlu0 %91
  %93 = vrot.lane.b32.xlu0 %v38, 16
  %v94 = vpop.permute.xlu0 %93
  %95 = vrot.lane.b32.xlu0 %v39, 16
  %v96 = vpop.permute.xlu0 %95
  %97 = vrot.lane.b32.xlu0 %v40, 16
  %v98 = vpop.permute.xlu0 %97
  %vm99 = vcmp.lt.s32.totalorder %v42, 16
  %v100 = vsel %vm99, %v96, %v98
  %v101 = vsel %vm99, %v94, %v96
  %v102 = vsel %vm99, %v92, %v94
  %v103 = vsel %vm99, %v98, %v92
  %v104 = vsel %vm71, %v103, 0.0
  %v105 = vsel %vm72, %v102, 0.0
  %v106 = vsel %vm73, %v101, 0.0
  %v107 = vsel %vm74, %v100, 0.0
  %108 = vst [vmem:[#allocation2 + $0x20] sm:$0xff] %v104
  %109 = vst [vmem:[#allocation2 + $0x28] sm:$0xff] %v105
  %110 = vst [vmem:[#allocation2 + $0x30] sm:$0xff] %v106
  %111 = vst [vmem:[#allocation2 + $0x38] sm:$0xff] %v107
  %112 = vrot.lane.b32.xlu0 %v37, 15
  %v113 = vpop.permute.xlu0 %112
  %114 = vrot.lane.b32.xlu0 %v38, 15
  %v115 = vpop.permute.xlu0 %114
  %116 = vrot.lane.b32.xlu0 %v39, 15
  %v117 = vpop.permute.xlu0 %116
  %118 = vrot.lane.b32.xlu0 %v40, 15
  %v119 = vpop.permute.xlu0 %118
  %vm120 = vcmp.lt.s32.totalorder %v42, 15
  %v121 = vsel %vm120, %v117, %v119
  %v122 = vsel %vm120, %v115, %v117
  %v123 = vsel %vm120, %v113, %v115
  %v124 = vsel %vm120, %v119, %v113
  %vm125 = vcmp.lt.s32.totalorder %v54, 15
  %vm126 = vcmp.lt.s32.totalorder %v55, 15
  %vm127 = vcmp.lt.s32.totalorder %v56, 15
  %vm128 = vcmp.lt.s32.totalorder %v57, 15
  %vm129 = vmand %vm71, %vm125
  %vm130 = vmand %vm72, %vm126
  %vm131 = vmand %vm73, %vm127
  %vm132 = vmand %vm74, %vm128
  %v133 = vsel %vm129, %v124, 0.0
  %v134 = vsel %vm130, %v123, 0.0
  %v135 = vsel %vm131, %v122, 0.0
  %v136 = vsel %vm132, %v121, 0.0
  %137 = vst [vmem:[#allocation2 + $0x40] sm:$0xff] %v133
  %138 = vst [vmem:[#allocation2 + $0x48] sm:$0xff] %v134
  %139 = vst [vmem:[#allocation2 + $0x50] sm:$0xff] %v135
  %140 = vst [vmem:[#allocation2 + $0x58] sm:$0xff] %v136
  %141 = vrot.lane.b32.xlu0 %v37, 1
  %v142 = vpop.permute.xlu0 %141
  %143 = vrot.lane.b32.xlu0 %v38, 1
  %v144 = vpop.permute.xlu0 %143
  %145 = vrot.lane.b32.xlu0 %v39, 1
  %v146 = vpop.permute.xlu0 %145
  %147 = vrot.lane.b32.xlu0 %v40, 1
  %v148 = vpop.permute.xlu0 %147
  %vm149 = vcmp.lt.s32.totalorder %v42, 1
  %v150 = vsel %vm149, %v146, %v148
  %v151 = vsel %vm149, %v144, %v146
  %v152 = vsel %vm149, %v142, %v144
  %v153 = vsel %vm149, %v148, %v142
  %v154 = vsel %vm75, %v153, 0.0
  %v155 = vsel %vm76, %v152, 0.0
  %v156 = vsel %vm77, %v151, 0.0
  %v157 = vsel %vm78, %v150, 0.0
  %158 = vst [vmem:[#allocation2 + $0x60] sm:$0xff] %v154
  %159 = vst [vmem:[#allocation2 + $0x68] sm:$0xff] %v155
  %160 = vst [vmem:[#allocation2 + $0x70] sm:$0xff] %v156
  %161 = vst [vmem:[#allocation2 + $0x78] sm:$0xff] %v157
  %162 = vst [vmem:[#allocation2 + $0x80] sm:$0xff] %v37
  %163 = vst [vmem:[#allocation2 + $0x88] sm:$0xff] %v38
  %164 = vst [vmem:[#allocation2 + $0x90] sm:$0xff] %v39
  %165 = vst [vmem:[#allocation2 + $0x98] sm:$0xff] %v40
  %166 = vrot.lane.b32.xlu0 %v37, 127
  %v167 = vpop.permute.xlu0 %166
  %168 = vrot.lane.b32.xlu0 %v38, 127
  %v169 = vpop.permute.xlu0 %168
  %170 = vrot.lane.b32.xlu0 %v39, 127
  %v171 = vpop.permute.xlu0 %170
  %172 = vrot.lane.b32.xlu0 %v40, 127
  %v173 = vpop.permute.xlu0 %172
  %vm174 = vcmp.lt.s32.totalorder %v42, 127
  %v175 = vsel %vm174, %v171, %v173
  %v176 = vsel %vm174, %v169, %v171
  %v177 = vsel %vm174, %v167, %v169
  %v178 = vsel %vm174, %v173, %v167
  %v179 = vsel %vm125, %v177, 0.0
  %v180 = vsel %vm126, %v176, 0.0
  %v181 = vsel %vm127, %v175, 0.0
  %v182 = vsel %vm128, %v178, 0.0
  %183 = vst [vmem:[#allocation2 + $0xa0] sm:$0xff] %v179
  %184 = vst [vmem:[#allocation2 + $0xa8] sm:$0xff] %v180
  %185 = vst [vmem:[#allocation2 + $0xb0] sm:$0xff] %v181
  %186 = vst [vmem:[#allocation2 + $0xb8] sm:$0xff] %v182
  %187 = vrot.lane.b32.xlu0 %v37, 113
  %v188 = vpop.permute.xlu0 %187
  %189 = vrot.lane.b32.xlu0 %v38, 113
  %v190 = vpop.permute.xlu0 %189
  %191 = vrot.lane.b32.xlu0 %v39, 113
  %v192 = vpop.permute.xlu0 %191
  %193 = vrot.lane.b32.xlu0 %v40, 113
  %v194 = vpop.permute.xlu0 %193
  %vm195 = vcmp.lt.s32.totalorder %v42, 113
  %v196 = vsel %vm195, %v192, %v194
  %v197 = vsel %vm195, %v190, %v192
  %v198 = vsel %vm195, %v188, %v190
  %v199 = vsel %vm195, %v194, %v188
  %vm200 = vcmp.lt.s32.totalorder %v50, 15
  %vm201 = vcmp.lt.s32.totalorder %v51, 15
  %vm202 = vcmp.lt.s32.totalorder %v52, 15
  %vm203 = vcmp.lt.s32.totalorder %v53, 15
  %vm204 = vmand %vm200, %vm75
  %vm205 = vmand %vm201, %vm76
  %vm206 = vmand %vm202, %vm77
  %vm207 = vmand %vm203, %vm78
  %v208 = vsel %vm204, %v198, 0.0
  %v209 = vsel %vm205, %v197, 0.0
  %v210 = vsel %vm206, %v196, 0.0
  %v211 = vsel %vm207, %v199, 0.0
  %212 = vst [vmem:[#allocation2 + $0xc0] sm:$0xff] %v208
  %213 = vst [vmem:[#allocation2 + $0xc8] sm:$0xff] %v209
  %214 = vst [vmem:[#allocation2 + $0xd0] sm:$0xff] %v210
  %215 = vst [vmem:[#allocation2 + $0xd8] sm:$0xff] %v211
  %216 = vrot.lane.b32.xlu0 %v37, 112
  %v217 = vpop.permute.xlu0 %216
  %218 = vrot.lane.b32.xlu0 %v38, 112
  %v219 = vpop.permute.xlu0 %218
  %220 = vrot.lane.b32.xlu0 %v39, 112
  %v221 = vpop.permute.xlu0 %220
  %222 = vrot.lane.b32.xlu0 %v40, 112
  %v223 = vpop.permute.xlu0 %222
  %vm224 = vcmp.lt.s32.totalorder %v42, 112
  %v225 = vsel %vm224, %v221, %v223
  %v226 = vsel %vm224, %v219, %v221
  %v227 = vsel %vm224, %v217, %v219
  %v228 = vsel %vm224, %v223, %v217
  %v229 = vsel %vm200, %v227, 0.0
  %v230 = vsel %vm201, %v226, 0.0
  %v231 = vsel %vm202, %v225, 0.0
  %v232 = vsel %vm203, %v228, 0.0
  %233 = vst [vmem:[#allocation2 + $0xe0] sm:$0xff] %v229
  %234 = vst [vmem:[#allocation2 + $0xe8] sm:$0xff] %v230
  %235 = vst [vmem:[#allocation2 + $0xf0] sm:$0xff] %v231
  %236 = vst [vmem:[#allocation2 + $0xf8] sm:$0xff] %v232
  %237 = vrot.lane.b32.xlu0 %v37, 111
  %v238 = vpop.permute.xlu0 %237
  %239 = vrot.lane.b32.xlu0 %v38, 111
  %v240 = vpop.permute.xlu0 %239
  %241 = vrot.lane.b32.xlu0 %v39, 111
  %v242 = vpop.permute.xlu0 %241
  %243 = vrot.lane.b32.xlu0 %v40, 111
  %v244 = vpop.permute.xlu0 %243
  %vm245 = vcmp.lt.s32.totalorder %v42, 111
  %v246 = vsel %vm245, %v242, %v244
  %v247 = vsel %vm245, %v240, %v242
  %v248 = vsel %vm245, %v238, %v240
  %v249 = vsel %vm245, %v244, %v238
  %vm250 = vmand %vm200, %vm125
  %vm251 = vmand %vm201, %vm126
  %vm252 = vmand %vm202, %vm127
  %vm253 = vmand %vm203, %vm128
  %v254 = vsel %vm250, %v248, 0.0
  %v255 = vsel %vm251, %v247, 0.0
  %v256 = vsel %vm252, %v246, 0.0
  %v257 = vsel %vm253, %v249, 0.0
  %258 = vst [vmem:[#allocation2 + $0x100] sm:$0xff] %v254
  %259 = vst [vmem:[#allocation2 + $0x108] sm:$0xff] %v255
  %260 = vst [vmem:[#allocation2 + $0x110] sm:$0xff] %v256
  %261 = vst [vmem:[#allocation2 + $0x118] sm:$0xff] %v257
  %v262 = vld [vmem:[%s1] sm:$0xff]
  %v263 = vld [vmem:[%s3] sm:$0x1]
  %vm264 = vcmask 64512
  %v266 = vsel %vm264, %v263, 0
  %268 = vmatpush.msra.mxu0 0.0
  %269 = vmatpush.msra.mxu0 0.0
  %270 = vmatpush.msra.mxu0 0.0
  %271 = vmatpush.msra.mxu0 0.0
  %272 = vmatpush.msra.mxu0 0.0
  %273 = vmatpush.msra.mxu0 0.0
  %274 = vmatpush.msra.mxu0 0.0
  %275 = vmatpush.msra.mxu0 0.0
  %276 = vmatpush.msra.mxu0 0.0
  %277 = vmatpush.msra.mxu0 0.0
  %278 = vmatpush.msra.mxu0 0.0
  %279 = vmatpush.msra.mxu0 0.0
  %280 = vmatpush.msra.mxu0 0.0
  %281 = vmatpush.msra.mxu0 0.0
  %282 = vmatpush.msra.mxu0 0.0
  %283 = vmatpush.msra.mxu0 %v262
  %284 = vmatmul.f32.gmra.mxu0 %v266
  %v285 = vpop.f32.mrf.mxu0
  %v286 = vadd.f32 0.0, %v285
  %287 = vdwg.mxu0
  %v288 = vmul.f32 %v286, %v286
  %vm289 = vcmask 57344
  %v290 = vsel %vm289, %v288, 0.0
  %291 = vadd.xlane.f32.xlu0 %v290
  %v292 = vpop.xlane.xlu0 %291
  %v293 = vrot.slane %v292, 4
  %v294 = vadd.f32 %v292, %v293
  %v295 = vrot.slane %v294, 2
  %v296 = vadd.f32 %v294, %v295
  %v297 = vrot.slane %v296, 1
  %v298 = vadd.f32 %v296, %v297
  %s299 = vtos %v298
  %v300 = vstv %s299
  %v301 = vrsqrt.pop %v300
  %v302 = vmul.f32 %v301, %v300
  %v303 = vmul.f32 %v302, %v301
  %v304 = vmul.f32 0.5, %v303
  %v305 = vsub.f32 1.5, %v304
  %v306 = vmul.f32 %v301, %v305
  %v307 = vmul.f32 %v300, %v306
  %vm308 = vcmp.eq.f32.partialorder %v300, inf
  %v309 = vsel %vm308, %v300, %v307
  %vm310 = vcmp.eq.f32.partialorder %v300, 0.0
  %v311 = vand.u32 %v300, 2147483648
  %v312 = vsel %vm310, %v311, %v309
  %s313 = vtos %v312
  %s314 = sadd.f32 %s313, 1e-12
  %v315 = vstv %s314
  %v316 = vrcp.pop %v315
  %v317 = vmul.f32 %v315, %v316
  %v318 = vsub.f32 1.0, %v317
  %v319 = vmul.f32 %v316, %v318
  %v320 = vadd.f32 %v316, %v319
  %vm321 = vweird.f32 %v315
  %vm322 = vweird.f32 %v316
  %vm323 = vmor %vm321, %vm322
  %v324 = vsel %vm323, %v316, %v320
  %v325 = vand.u32 2147483647, %v315
  %vm326 = vcmp.eq.f32.partialorder %v325, 8.507059e+37
  %v327 = vand.u32 %v315, 2147483648
  %v328 = vor.u32 1.1754944e-38, %v327
  %v329 = vsel %vm326, %v328, %v324
  %v330 = vmul.f32 %v286, %v329
  %v332 = vsel %vm264, %v330, 0
  %v335 = vsel %vm264, %v262, 0
  %337 = vmatpush.xpose.msra.mxu0 0.0
  %338 = vmatpush.xpose.msra.mxu0 0.0
  %339 = vmatpush.xpose.msra.mxu0 0.0
  %340 = vmatpush.xpose.msra.mxu0 0.0
  %341 = vmatpush.xpose.msra.mxu0 0.0
  %342 = vmatpush.xpose.msra.mxu0 0.0
  %343 = vmatpush.xpose.msra.mxu0 0.0
  %344 = vmatpush.xpose.msra.mxu0 0.0
  %345 = vmatpush.xpose.msra.mxu0 0.0
  %346 = vmatpush.xpose.msra.mxu0 0.0
  %347 = vmatpush.xpose.msra.mxu0 0.0
  %348 = vmatpush.xpose.msra.mxu0 0.0
  %349 = vmatpush.xpose.msra.mxu0 0.0
  %350 = vmatpush.xpose.msra.mxu0 0.0
  %351 = vmatpush.xpose.msra.mxu0 0.0
  %352 = vmatpush.xpose.msra.mxu0 %v335
  %353 = vmatmul.f32.gmra.mxu0 %v332
  %v354 = vpop.f32.mrf.mxu0
  %v355 = vadd.f32 0.0, %v354
  %356 = vdwg.mxu0
  %v357 = vmul.f32 %v355, %v355
  %v358 = vsel %vm289, %v357, 0.0
  %359 = vadd.xlane.f32.xlu0 %v358
  %v360 = vpop.xlane.xlu0 %359
  %v361 = vrot.slane %v360, 4
  %v362 = vadd.f32 %v360, %v361
  %v363 = vrot.slane %v362, 2
  %v364 = vadd.f32 %v362, %v363
  %v365 = vrot.slane %v364, 1
  %v366 = vadd.f32 %v364, %v365
  %s367 = vtos %v366
  %v368 = vstv %s367
  %v369 = vrsqrt.pop %v368
  %v370 = vmul.f32 %v369, %v368
  %v371 = vmul.f32 %v370, %v369
  %v372 = vmul.f32 0.5, %v371
  %v373 = vsub.f32 1.5, %v372
  %v374 = vmul.f32 %v369, %v373
  %v375 = vmul.f32 %v368, %v374
  %vm376 = vcmp.eq.f32.partialorder %v368, inf
  %v377 = vsel %vm376, %v368, %v375
  %vm378 = vcmp.eq.f32.partialorder %v368, 0.0
  %v379 = vand.u32 %v368, 2147483648
  %v380 = vsel %vm378, %v379, %v377
  %s381 = vtos %v380
  %s382 = sadd.f32 %s381, 1e-12
  %v383 = vstv %s382
  %v384 = vrcp.pop %v383
  %v385 = vmul.f32 %v383, %v384
  %v386 = vsub.f32 1.0, %v385
  %v387 = vmul.f32 %v384, %v386
  %v388 = vadd.f32 %v384, %v387
  %vm389 = vweird.f32 %v383
  %vm390 = vweird.f32 %v384
  %vm391 = vmor %vm389, %vm390
  %v392 = vsel %vm391, %v384, %v388
  %v393 = vand.u32 2147483647, %v383
  %vm394 = vcmp.eq.f32.partialorder %v393, 8.507059e+37
  %v395 = vand.u32 %v383, 2147483648
  %v396 = vor.u32 1.1754944e-38, %v395
  %v397 = vsel %vm394, %v396, %v392
  %v398 = vmul.f32 %v355, %v397
  %v399 = vmul.f32 %v398, %v355
  %v400 = vsel %vm289, %v399, 0.0
  %401 = vadd.xlane.f32.xlu0 %v400
  %v402 = vpop.xlane.xlu0 %401
  %v403 = vrot.slane %v402, 4
  %v404 = vadd.f32 %v402, %v403
  %v405 = vrot.slane %v404, 2
  %v406 = vadd.f32 %v404, %v405
  %v407 = vrot.slane %v406, 1
  %v408 = vadd.f32 %v406, %v407
  %s409 = vtos %v408
  %v410 = vstv %s409
  %v411 = vrcp.pop %v410
  %v412 = vmul.f32 %v410, %v411
  %v413 = vsub.f32 1.0, %v412
  %v414 = vmul.f32 %v411, %v413
  %v415 = vadd.f32 %v411, %v414
  %vm416 = vweird.f32 %v410
  %vm417 = vweird.f32 %v411
  %vm418 = vmor %vm416, %vm417
  %v419 = vsel %vm418, %v411, %v415
  %v420 = vand.u32 2147483647, %v410
  %vm421 = vcmp.eq.f32.partialorder %v420, 8.507059e+37
  %v422 = vand.u32 %v410, 2147483648
  %v423 = vor.u32 1.1754944e-38, %v422
  %v424 = vsel %vm421, %v423, %v419
  %s425 = vtos %v424
  %v426 = vld [vmem:[%s4] sm:$0xff]
  %v427 = vld [vmem:[%s6] sm:$0x1]
  %v429 = vsel %vm264, %v427, 0
  %431 = vmatpush.msra.mxu0 0.0
  %432 = vmatpush.msra.mxu0 0.0
  %433 = vmatpush.msra.mxu0 0.0
  %434 = vmatpush.msra.mxu0 0.0
  %435 = vmatpush.msra.mxu0 0.0
  %436 = vmatpush.msra.mxu0 0.0
  %437 = vmatpush.msra.mxu0 0.0
  %438 = vmatpush.msra.mxu0 0.0
  %439 = vmatpush.msra.mxu0 0.0
  %440 = vmatpush.msra.mxu0 0.0
  %441 = vmatpush.msra.mxu0 0.0
  %442 = vmatpush.msra.mxu0 0.0
  %443 = vmatpush.msra.mxu0 0.0
  %444 = vmatpush.msra.mxu0 0.0
  %445 = vmatpush.msra.mxu0 0.0
  %446 = vmatpush.msra.mxu0 %v426
  %447 = vmatmul.f32.gmra.mxu0 %v429
  %v448 = vpop.f32.mrf.mxu0
  %v449 = vadd.f32 0.0, %v448
  %450 = vdwg.mxu0
  %v451 = vmul.f32 %v449, %v449
  %vm452 = vcmask 581632
  %v453 = vsel %vm452, %v451, 0.0
  %454 = vadd.xlane.f32.xlu0 %v453
  %v455 = vpop.xlane.xlu0 %454
  %v456 = vrot.slane %v455, 4
  %v457 = vadd.f32 %v455, %v456
  %v458 = vrot.slane %v457, 2
  %v459 = vadd.f32 %v457, %v458
  %v460 = vrot.slane %v459, 1
  %v461 = vadd.f32 %v459, %v460
  %s462 = vtos %v461
  %v463 = vstv %s462
  %v464 = vrsqrt.pop %v463
  %v465 = vmul.f32 %v464, %v463
  %v466 = vmul.f32 %v465, %v464
  %v467 = vmul.f32 0.5, %v466
  %v468 = vsub.f32 1.5, %v467
  %v469 = vmul.f32 %v464, %v468
  %v470 = vmul.f32 %v463, %v469
  %vm471 = vcmp.eq.f32.partialorder %v463, inf
  %v472 = vsel %vm471, %v463, %v470
  %vm473 = vcmp.eq.f32.partialorder %v463, 0.0
  %v474 = vand.u32 %v463, 2147483648
  %v475 = vsel %vm473, %v474, %v472
  %s476 = vtos %v475
  %s477 = sadd.f32 %s476, 1e-12
  %v478 = vstv %s477
  %v479 = vrcp.pop %v478
  %v480 = vmul.f32 %v478, %v479
  %v481 = vsub.f32 1.0, %v480
  %v482 = vmul.f32 %v479, %v481
  %v483 = vadd.f32 %v479, %v482
  %vm484 = vweird.f32 %v478
  %vm485 = vweird.f32 %v479
  %vm486 = vmor %vm484, %vm485
  %v487 = vsel %vm486, %v479, %v483
  %v488 = vand.u32 2147483647, %v478
  %vm489 = vcmp.eq.f32.partialorder %v488, 8.507059e+37
  %v490 = vand.u32 %v478, 2147483648
  %v491 = vor.u32 1.1754944e-38, %v490
  %v492 = vsel %vm489, %v491, %v487
  %v493 = vmul.f32 %v449, %v492
  %vm494 = vcmask 588800
  %v496 = vsel %vm494, %v493, 0
  %v499 = vsel %vm494, %v426, 0
  %501 = vmatpush.xpose.msra.mxu0 0.0
  %502 = vmatpush.xpose.msra.mxu0 0.0
  %503 = vmatpush.xpose.msra.mxu0 0.0
  %504 = vmatpush.xpose.msra.mxu0 0.0
  %505 = vmatpush.xpose.msra.mxu0 0.0
  %506 = vmatpush.xpose.msra.mxu0 0.0
  %507 = vmatpush.xpose.msra.mxu0 0.0
  %508 = vmatpush.xpose.msra.mxu0 0.0
  %509 = vmatpush.xpose.msra.mxu0 0.0
  %510 = vmatpush.xpose.msra.mxu0 0.0
  %511 = vmatpush.xpose.msra.mxu0 0.0
  %512 = vmatpush.xpose.msra.mxu0 0.0
  %513 = vmatpush.xpose.msra.mxu0 0.0
  %514 = vmatpush.xpose.msra.mxu0 0.0
  %515 = vmatpush.xpose.msra.mxu0 0.0
  %516 = vmatpush.xpose.msra.mxu0 %v499
  %517 = vmatmul.f32.gmra.mxu0 %v496
  %v518 = vpop.f32.mrf.mxu0
  %v519 = vadd.f32 0.0, %v518
  %520 = vdwg.mxu0
  %v521 = vmul.f32 %v519, %v519
  %v522 = vsel %vm289, %v521, 0.0
  %523 = vadd.xlane.f32.xlu0 %v522
  %v524 = vpop.xlane.xlu0 %523
  %v525 = vrot.slane %v524, 4
  %v526 = vadd.f32 %v524, %v525
  %v527 = vrot.slane %v526, 2
  %v528 = vadd.f32 %v526, %v527
  %v529 = vrot.slane %v528, 1
  %v530 = vadd.f32 %v528, %v529
  %s531 = vtos %v530
  %v532 = vstv %s531
  %v533 = vrsqrt.pop %v532
  %v534 = vmul.f32 %v533, %v532
  %v535 = vmul.f32 %v534, %v533
  %v536 = vmul.f32 0.5, %v535
  %v537 = vsub.f32 1.5, %v536
  %v538 = vmul.f32 %v533, %v537
  %v539 = vmul.f32 %v532, %v538
  %vm540 = vcmp.eq.f32.partialorder %v532, inf
  %v541 = vsel %vm540, %v532, %v539
  %vm542 = vcmp.eq.f32.partialorder %v532, 0.0
  %v543 = vand.u32 %v532, 2147483648
  %v544 = vsel %vm542, %v543, %v541
  %s545 = vtos %v544
  %s546 = sadd.f32 %s545, 1e-12
  %v547 = vstv %s546
  %v548 = vrcp.pop %v547
  %v549 = vmul.f32 %v547, %v548
  %v550 = vsub.f32 1.0, %v549
  %v551 = vmul.f32 %v548, %v550
  %v552 = vadd.f32 %v548, %v551
  %vm553 = vweird.f32 %v547
  %vm554 = vweird.f32 %v548
  %vm555 = vmor %vm553, %vm554
  %v556 = vsel %vm555, %v548, %v552
  %v557 = vand.u32 2147483647, %v547
  %vm558 = vcmp.eq.f32.partialorder %v557, 8.507059e+37
  %v559 = vand.u32 %v547, 2147483648
  %v560 = vor.u32 1.1754944e-38, %v559
  %v561 = vsel %vm558, %v560, %v556
  %v562 = vmul.f32 %v519, %v561
  %v563 = vmul.f32 %v562, %v519
  %v564 = vsel %vm289, %v563, 0.0
  %565 = vadd.xlane.f32.xlu0 %v564
  %v566 = vpop.xlane.xlu0 %565
  %v567 = vrot.slane %v566, 4
  %v568 = vadd.f32 %v566, %v567
  %v569 = vrot.slane %v568, 2
  %v570 = vadd.f32 %v568, %v569
  %v571 = vrot.slane %v570, 1
  %v572 = vadd.f32 %v570, %v571
  %s573 = vtos %v572
  %v574 = vstv %s573
  %v575 = vrcp.pop %v574
  %v576 = vmul.f32 %v574, %v575
  %v577 = vsub.f32 1.0, %v576
  %v578 = vmul.f32 %v575, %v577
  %v579 = vadd.f32 %v575, %v578
  %vm580 = vweird.f32 %v574
  %vm581 = vweird.f32 %v575
  %vm582 = vmor %vm580, %vm581
  %v583 = vsel %vm582, %v575, %v579
  %v584 = vand.u32 2147483647, %v574
  %vm585 = vcmp.eq.f32.partialorder %v584, 8.507059e+37
  %v586 = vand.u32 %v574, 2147483648
  %v587 = vor.u32 1.1754944e-38, %v586
  %v588 = vsel %vm585, %v587, %v583
  %s589 = vtos %v588
  %v590 = vld [vmem:[%s7] sm:$0xff]
  %v591 = vld [vmem:[%s9] sm:$0x1]
  %v593 = vsel %vm264, %v591, 0
  %595 = vmatpush.msra.mxu0 0.0
  %596 = vmatpush.msra.mxu0 0.0
  %597 = vmatpush.msra.mxu0 0.0
  %598 = vmatpush.msra.mxu0 0.0
  %599 = vmatpush.msra.mxu0 0.0
  %600 = vmatpush.msra.mxu0 0.0
  %601 = vmatpush.msra.mxu0 0.0
  %602 = vmatpush.msra.mxu0 0.0
  %603 = vmatpush.msra.mxu0 0.0
  %604 = vmatpush.msra.mxu0 0.0
  %605 = vmatpush.msra.mxu0 0.0
  %606 = vmatpush.msra.mxu0 0.0
  %607 = vmatpush.msra.mxu0 0.0
  %608 = vmatpush.msra.mxu0 0.0
  %609 = vmatpush.msra.mxu0 0.0
  %610 = vmatpush.msra.mxu0 %v590
  %611 = vmatmul.f32.gmra.mxu0 %v593
  %v612 = vpop.f32.mrf.mxu0
  %v613 = vadd.f32 0.0, %v612
  %614 = vdwg.mxu0
  %v615 = vmul.f32 %v613, %v613
  %v616 = vsel %vm452, %v615, 0.0
  %617 = vadd.xlane.f32.xlu0 %v616
  %v618 = vpop.xlane.xlu0 %617
  %v619 = vrot.slane %v618, 4
  %v620 = vadd.f32 %v618, %v619
  %v621 = vrot.slane %v620, 2
  %v622 = vadd.f32 %v620, %v621
  %v623 = vrot.slane %v622, 1
  %v624 = vadd.f32 %v622, %v623
  %s625 = vtos %v624
  %v626 = vstv %s625
  %v627 = vrsqrt.pop %v626
  %v628 = vmul.f32 %v627, %v626
  %v629 = vmul.f32 %v628, %v627
  %v630 = vmul.f32 0.5, %v629
  %v631 = vsub.f32 1.5, %v630
  %v632 = vmul.f32 %v627, %v631
  %v633 = vmul.f32 %v626, %v632
  %vm634 = vcmp.eq.f32.partialorder %v626, inf
  %v635 = vsel %vm634, %v626, %v633
  %vm636 = vcmp.eq.f32.partialorder %v626, 0.0
  %v637 = vand.u32 %v626, 2147483648
  %v638 = vsel %vm636, %v637, %v635
  %s639 = vtos %v638
  %s640 = sadd.f32 %s639, 1e-12
  %v641 = vstv %s640
  %v642 = vrcp.pop %v641
  %v643 = vmul.f32 %v641, %v642
  %v644 = vsub.f32 1.0, %v643
  %v645 = vmul.f32 %v642, %v644
  %v646 = vadd.f32 %v642, %v645
  %vm647 = vweird.f32 %v641
  %vm648 = vweird.f32 %v642
  %vm649 = vmor %vm647, %vm648
  %v650 = vsel %vm649, %v642, %v646
  %v651 = vand.u32 2147483647, %v641
  %vm652 = vcmp.eq.f32.partialorder %v651, 8.507059e+37
  %v653 = vand.u32 %v641, 2147483648
  %v654 = vor.u32 1.1754944e-38, %v653
  %v655 = vsel %vm652, %v654, %v650
  %v656 = vmul.f32 %v613, %v655
  %v658 = vsel %vm494, %v656, 0
  %v661 = vsel %vm494, %v590, 0
  %663 = vmatpush.xpose.msra.mxu0 0.0
  %664 = vmatpush.xpose.msra.mxu0 0.0
  %665 = vmatpush.xpose.msra.mxu0 0.0
  %666 = vmatpush.xpose.msra.mxu0 0.0
  %667 = vmatpush.xpose.msra.mxu0 0.0
  %668 = vmatpush.xpose.msra.mxu0 0.0
  %669 = vmatpush.xpose.msra.mxu0 0.0
  %670 = vmatpush.xpose.msra.mxu0 0.0
  %671 = vmatpush.xpose.msra.mxu0 0.0
  %672 = vmatpush.xpose.msra.mxu0 0.0
  %673 = vmatpush.xpose.msra.mxu0 0.0
  %674 = vmatpush.xpose.msra.mxu0 0.0
  %675 = vmatpush.xpose.msra.mxu0 0.0
  %676 = vmatpush.xpose.msra.mxu0 0.0
  %677 = vmatpush.xpose.msra.mxu0 0.0
  %678 = vmatpush.xpose.msra.mxu0 %v661
  %679 = vmatmul.f32.gmra.mxu0 %v658
  %v680 = vpop.f32.mrf.mxu0
  %v681 = vadd.f32 0.0, %v680
  %682 = vdwg.mxu0
  %v683 = vmul.f32 %v681, %v681
  %v684 = vsel %vm289, %v683, 0.0
  %685 = vadd.xlane.f32.xlu0 %v684
  %v686 = vpop.xlane.xlu0 %685
  %v687 = vrot.slane %v686, 4
  %v688 = vadd.f32 %v686, %v687
  %v689 = vrot.slane %v688, 2
  %v690 = vadd.f32 %v688, %v689
  %v691 = vrot.slane %v690, 1
  %v692 = vadd.f32 %v690, %v691
  %s693 = vtos %v692
  %v694 = vstv %s693
  %v695 = vrsqrt.pop %v694
  %v696 = vmul.f32 %v695, %v694
  %v697 = vmul.f32 %v696, %v695
  %v698 = vmul.f32 0.5, %v697
  %v699 = vsub.f32 1.5, %v698
  %v700 = vmul.f32 %v695, %v699
  %v701 = vmul.f32 %v694, %v700
  %vm702 = vcmp.eq.f32.partialorder %v694, inf
  %v703 = vsel %vm702, %v694, %v701
  %vm704 = vcmp.eq.f32.partialorder %v694, 0.0
  %v705 = vand.u32 %v694, 2147483648
  %v706 = vsel %vm704, %v705, %v703
  %s707 = vtos %v706
  %s708 = sadd.f32 %s707, 1e-12
  %v709 = vstv %s708
  %v710 = vrcp.pop %v709
  %v711 = vmul.f32 %v709, %v710
  %v712 = vsub.f32 1.0, %v711
  %v713 = vmul.f32 %v710, %v712
  %v714 = vadd.f32 %v710, %v713
  %vm715 = vweird.f32 %v709
  %vm716 = vweird.f32 %v710
  %vm717 = vmor %vm715, %vm716
  %v718 = vsel %vm717, %v710, %v714
  %v719 = vand.u32 2147483647, %v709
  %vm720 = vcmp.eq.f32.partialorder %v719, 8.507059e+37
  %v721 = vand.u32 %v709, 2147483648
  %v722 = vor.u32 1.1754944e-38, %v721
  %v723 = vsel %vm720, %v722, %v718
  %v724 = vmul.f32 %v681, %v723
  %v725 = vmul.f32 %v724, %v681
  %v726 = vsel %vm289, %v725, 0.0
  %727 = vadd.xlane.f32.xlu0 %v726
  %v728 = vpop.xlane.xlu0 %727
  %v729 = vrot.slane %v728, 4
  %v730 = vadd.f32 %v728, %v729
  %v731 = vrot.slane %v730, 2
  %v732 = vadd.f32 %v730, %v731
  %v733 = vrot.slane %v732, 1
  %v734 = vadd.f32 %v732, %v733
  %s735 = vtos %v734
  %v736 = vstv %s735
  %v737 = vrcp.pop %v736
  %v738 = vmul.f32 %v736, %v737
  %v739 = vsub.f32 1.0, %v738
  %v740 = vmul.f32 %v737, %v739
  %v741 = vadd.f32 %v737, %v740
  %vm742 = vweird.f32 %v736
  %vm743 = vweird.f32 %v737
  %vm744 = vmor %vm742, %vm743
  %v745 = vsel %vm744, %v737, %v741
  %v746 = vand.u32 2147483647, %v736
  %vm747 = vcmp.eq.f32.partialorder %v746, 8.507059e+37
  %v748 = vand.u32 %v736, 2147483648
  %v749 = vor.u32 1.1754944e-38, %v748
  %v750 = vsel %vm747, %v749, %v745
  %s751 = vtos %v750
  %752 = vst [vmem:[%s11] sm:$0xff] 0.0
  %753 = vst.msk [vmem:[%s11] sm:$0x1] %vm289, %v398
  %754 = vst.msk [vmem:[%s11 + $0x1] sm:$0x1] %vm289, %v330
  %755 = vst.msk [vmem:[%s11 + $0x2] sm:$0x1] %vm289, %v562
  %756 = vst.msk [vmem:[%s11 + $0x3] sm:$0x1] %vm452, %v493
  %757 = vst.msk [vmem:[%s11 + $0x4] sm:$0x1] %vm289, %v724
  %758 = vst.msk [vmem:[%s11 + $0x5] sm:$0x1] %vm452, %v656
  %v759 = vld [vmem:[%s1] sm:$0xff]
  %v761 = vsel %vm264, %v759, 0
  %763 = vmatpush.msra.mxu0 0.0
  %764 = vmatpush.msra.mxu0 0.0
  %765 = vmatpush.msra.mxu0 0.0
  %766 = vmatpush.msra.mxu0 0.0
  %767 = vmatpush.msra.mxu0 0.0
  %768 = vmatpush.msra.mxu0 0.0
  %769 = vmatpush.msra.mxu0 0.0
  %770 = vmatpush.msra.mxu0 0.0
  %771 = vmatpush.msra.mxu0 0.0
  %772 = vmatpush.msra.mxu0 0.0
  %773 = vmatpush.msra.mxu0 0.0
  %774 = vmatpush.msra.mxu0 0.0
  %775 = vmatpush.msra.mxu0 0.0
  %776 = vmatpush.msra.mxu0 0.0
  %777 = vmatpush.msra.mxu0 0.0
  %778 = vmatpush.msra.mxu0 %v37
  %779 = vmatmul.f32.gmra.mxu0 %v761
  %v780 = vpop.f32.mrf.mxu0
  %v781 = vadd.f32 0.0, %v780
  %782 = vdwg.mxu0
  %783 = vmatpush.msra.mxu0 0.0
  %784 = vmatpush.msra.mxu0 0.0
  %785 = vmatpush.msra.mxu0 0.0
  %786 = vmatpush.msra.mxu0 0.0
  %787 = vmatpush.msra.mxu0 0.0
  %788 = vmatpush.msra.mxu0 0.0
  %789 = vmatpush.msra.mxu0 0.0
  %790 = vmatpush.msra.mxu0 0.0
  %791 = vmatpush.msra.mxu0 0.0
  %792 = vmatpush.msra.mxu0 0.0
  %793 = vmatpush.msra.mxu0 0.0
  %794 = vmatpush.msra.mxu0 0.0
  %795 = vmatpush.msra.mxu0 0.0
  %796 = vmatpush.msra.mxu0 0.0
  %797 = vmatpush.msra.mxu0 0.0
  %798 = vmatpush.msra.mxu0 %v38
  %799 = vmatmul.f32.gmra.mxu0 %v761
  %v800 = vpop.f32.mrf.mxu0
  %v801 = vadd.f32 0.0, %v800
  %802 = vdwg.mxu0
  %803 = vmatpush.msra.mxu0 0.0
  %804 = vmatpush.msra.mxu0 0.0
  %805 = vmatpush.msra.mxu0 0.0
  %806 = vmatpush.msra.mxu0 0.0
  %807 = vmatpush.msra.mxu0 0.0
  %808 = vmatpush.msra.mxu0 0.0
  %809 = vmatpush.msra.mxu0 0.0
  %810 = vmatpush.msra.mxu0 0.0
  %811 = vmatpush.msra.mxu0 0.0
  %812 = vmatpush.msra.mxu0 0.0
  %813 = vmatpush.msra.mxu0 0.0
  %814 = vmatpush.msra.mxu0 0.0
  %815 = vmatpush.msra.mxu0 0.0
  %816 = vmatpush.msra.mxu0 0.0
  %817 = vmatpush.msra.mxu0 0.0
  %818 = vmatpush.msra.mxu0 %v39
  %819 = vmatmul.f32.gmra.mxu0 %v761
  %v820 = vpop.f32.mrf.mxu0
  %v821 = vadd.f32 0.0, %v820
  %822 = vdwg.mxu0
  %823 = vmatpush.msra.mxu0 0.0
  %824 = vmatpush.msra.mxu0 0.0
  %825 = vmatpush.msra.mxu0 0.0
  %826 = vmatpush.msra.mxu0 0.0
  %827 = vmatpush.msra.mxu0 0.0
  %828 = vmatpush.msra.mxu0 0.0
  %829 = vmatpush.msra.mxu0 0.0
  %830 = vmatpush.msra.mxu0 0.0
  %831 = vmatpush.msra.mxu0 0.0
  %832 = vmatpush.msra.mxu0 0.0
  %833 = vmatpush.msra.mxu0 0.0
  %834 = vmatpush.msra.mxu0 0.0
  %835 = vmatpush.msra.mxu0 0.0
  %836 = vmatpush.msra.mxu0 0.0
  %837 = vmatpush.msra.mxu0 0.0
  %838 = vmatpush.msra.mxu0 %v40
  %839 = vmatmul.f32.gmra.mxu0 %v761
  %v840 = vpop.f32.mrf.mxu0
  %v841 = vadd.f32 0.0, %v840
  %842 = vdwg.mxu0
  %v843 = vstv %s425
  %v844 = vmul.f32 %v781, %v843
  %v845 = vmul.f32 %v801, %v843
  %v846 = vmul.f32 %v821, %v843
  %v847 = vmul.f32 %v841, %v843
  %v848 = vld [vmem:[%s2] sm:$0xff]
  %850 = vset.pattern.permute.xlu0 0
  %851 = vperm.xlu0 %850, %v848
  %v852 = vpop.permute.xlu0 %851
  %v854 = vadd.f32 %v844, %v852
  %v855 = vadd.f32 %v845, %v852
  %v856 = vadd.f32 %v846, %v852
  %v857 = vadd.f32 %v847, %v852
  %v858 = vld [vmem:[%s4] sm:$0xff]
  %v859 = vld [vmem:[#allocation2] sm:$0xff]
  %v860 = vld [vmem:[#allocation2 + $0x8] sm:$0xff]
  %v861 = vld [vmem:[#allocation2 + $0x10] sm:$0xff]
  %v862 = vld [vmem:[#allocation2 + $0x18] sm:$0xff]
  %v863 = vld [vmem:[#allocation2 + $0x20] sm:$0xff]
  %v864 = vld [vmem:[#allocation2 + $0x28] sm:$0xff]
  %v865 = vld [vmem:[#allocation2 + $0x30] sm:$0xff]
  %v866 = vld [vmem:[#allocation2 + $0x38] sm:$0xff]
  %v867 = vld [vmem:[#allocation2 + $0x40] sm:$0xff]
  %v868 = vld [vmem:[#allocation2 + $0x48] sm:$0xff]
  %v869 = vld [vmem:[#allocation2 + $0x50] sm:$0xff]
  %v870 = vld [vmem:[#allocation2 + $0x58] sm:$0xff]
  %v871 = vld [vmem:[#allocation2 + $0x60] sm:$0xff]
  %v872 = vld [vmem:[#allocation2 + $0x68] sm:$0xff]
  %v873 = vld [vmem:[#allocation2 + $0x70] sm:$0xff]
  %v874 = vld [vmem:[#allocation2 + $0x78] sm:$0xff]
  %v875 = vld [vmem:[#allocation2 + $0x80] sm:$0xff]
  %v876 = vld [vmem:[#allocation2 + $0x88] sm:$0xff]
  %v877 = vld [vmem:[#allocation2 + $0x90] sm:$0xff]
  %v878 = vld [vmem:[#allocation2 + $0x98] sm:$0xff]
  %v879 = vld [vmem:[#allocation2 + $0xa0] sm:$0xff]
  %v880 = vld [vmem:[#allocation2 + $0xa8] sm:$0xff]
  %v881 = vld [vmem:[#allocation2 + $0xb0] sm:$0xff]
  %v882 = vld [vmem:[#allocation2 + $0xb8] sm:$0xff]
  %v883 = vld [vmem:[#allocation2 + $0xc0] sm:$0xff]
  %v884 = vld [vmem:[#allocation2 + $0xc8] sm:$0xff]
  %v885 = vld [vmem:[#allocation2 + $0xd0] sm:$0xff]
  %v886 = vld [vmem:[#allocation2 + $0xd8] sm:$0xff]
  %v887 = vld [vmem:[#allocation2 + $0xe0] sm:$0xff]
  %v888 = vld [vmem:[#allocation2 + $0xe8] sm:$0xff]
  %v889 = vld [vmem:[#allocation2 + $0xf0] sm:$0xff]
  %v890 = vld [vmem:[#allocation2 + $0xf8] sm:$0xff]
  %v891 = vld [vmem:[#allocation2 + $0x100] sm:$0xff]
  %v892 = vld [vmem:[#allocation2 + $0x108] sm:$0xff]
  %v893 = vld [vmem:[#allocation2 + $0x110] sm:$0xff]
  %v894 = vld [vmem:[#allocation2 + $0x118] sm:$0xff]
  %v896 = vsel %vm494, %v858, 0
  %898 = vmatpush.msra.mxu0 0.0
  %899 = vmatpush.msra.mxu0 0.0
  %900 = vmatpush.msra.mxu0 0.0
  %901 = vmatpush.msra.mxu0 0.0
  %902 = vmatpush.msra.mxu0 0.0
  %903 = vmatpush.msra.mxu0 0.0
  %904 = vmatpush.msra.mxu0 0.0
  %905 = vmatpush.msra.mxu0 %v891
  %906 = vmatpush.msra.mxu0 %v887
  %907 = vmatpush.msra.mxu0 %v883
  %908 = vmatpush.msra.mxu0 %v879
  %909 = vmatpush.msra.mxu0 %v875
  %910 = vmatpush.msra.mxu0 %v871
  %911 = vmatpush.msra.mxu0 %v867
  %912 = vmatpush.msra.mxu0 %v863
  %913 = vmatpush.msra.mxu0 %v859
  %914 = vmatmul.f32.gmra.mxu0 %v896
  %v915 = vpop.f32.mrf.mxu0
  %v916 = vadd.f32 0.0, %v915
  %917 = vdwg.mxu0
  %918 = vmatpush.msra.mxu0 0.0
  %919 = vmatpush.msra.mxu0 0.0
  %920 = vmatpush.msra.mxu0 0.0
  %921 = vmatpush.msra.mxu0 0.0
  %922 = vmatpush.msra.mxu0 0.0
  %923 = vmatpush.msra.mxu0 0.0
  %924 = vmatpush.msra.mxu0 0.0
  %925 = vmatpush.msra.mxu0 %v892
  %926 = vmatpush.msra.mxu0 %v888
  %927 = vmatpush.msra.mxu0 %v884
  %928 = vmatpush.msra.mxu0 %v880
  %929 = vmatpush.msra.mxu0 %v876
  %930 = vmatpush.msra.mxu0 %v872
  %931 = vmatpush.msra.mxu0 %v868
  %932 = vmatpush.msra.mxu0 %v864
  %933 = vmatpush.msra.mxu0 %v860
  %934 = vmatmul.f32.gmra.mxu0 %v896
  %v935 = vpop.f32.mrf.mxu0
  %v936 = vadd.f32 0.0, %v935
  %937 = vdwg.mxu0
  %938 = vmatpush.msra.mxu0 0.0
  %939 = vmatpush.msra.mxu0 0.0
  %940 = vmatpush.msra.mxu0 0.0
  %941 = vmatpush.msra.mxu0 0.0
  %942 = vmatpush.msra.mxu0 0.0
  %943 = vmatpush.msra.mxu0 0.0
  %944 = vmatpush.msra.mxu0 0.0
  %945 = vmatpush.msra.mxu0 %v893
  %946 = vmatpush.msra.mxu0 %v889
  %947 = vmatpush.msra.mxu0 %v885
  %948 = vmatpush.msra.mxu0 %v881
  %949 = vmatpush.msra.mxu0 %v877
  %950 = vmatpush.msra.mxu0 %v873
  %951 = vmatpush.msra.mxu0 %v869
  %952 = vmatpush.msra.mxu0 %v865
  %953 = vmatpush.msra.mxu0 %v861
  %954 = vmatmul.f32.gmra.mxu0 %v896
  %v955 = vpop.f32.mrf.mxu0
  %v956 = vadd.f32 0.0, %v955
  %957 = vdwg.mxu0
  %958 = vmatpush.msra.mxu0 0.0
  %959 = vmatpush.msra.mxu0 0.0
  %960 = vmatpush.msra.mxu0 0.0
  %961 = vmatpush.msra.mxu0 0.0
  %962 = vmatpush.msra.mxu0 0.0
  %963 = vmatpush.msra.mxu0 0.0
  %964 = vmatpush.msra.mxu0 0.0
  %965 = vmatpush.msra.mxu0 %v894
  %966 = vmatpush.msra.mxu0 %v890
  %967 = vmatpush.msra.mxu0 %v886
  %968 = vmatpush.msra.mxu0 %v882
  %969 = vmatpush.msra.mxu0 %v878
  %970 = vmatpush.msra.mxu0 %v874
  %971 = vmatpush.msra.mxu0 %v870
  %972 = vmatpush.msra.mxu0 %v866
  %973 = vmatpush.msra.mxu0 %v862
  %974 = vmatmul.f32.gmra.mxu0 %v896
  %v975 = vpop.f32.mrf.mxu0
  %v976 = vadd.f32 0.0, %v975
  %977 = vdwg.mxu0
  %v978 = vstv %s589
  %v979 = vmul.f32 %v916, %v978
  %v980 = vmul.f32 %v936, %v978
  %v981 = vmul.f32 %v956, %v978
  %v982 = vmul.f32 %v976, %v978
  %v983 = vld [vmem:[%s5] sm:$0xff]
  %985 = vset.pattern.permute.xlu0 0
  %986 = vperm.xlu0 %985, %v983
  %v987 = vpop.permute.xlu0 %986
  %v989 = vadd.f32 %v979, %v987
  %v990 = vadd.f32 %v980, %v987
  %v991 = vadd.f32 %v981, %v987
  %v992 = vadd.f32 %v982, %v987
  %v993 = vmax.f32 %v989, 0.0
  %v994 = vmax.f32 %v990, 0.0
  %v995 = vmax.f32 %v991, 0.0
  %v996 = vmax.f32 %v992, 0.0
  %997 = vrot.lane.b32.xlu0 %v993, 17
  %v998 = vpop.permute.xlu0 %997
  %999 = vrot.lane.b32.xlu0 %v994, 17
  %v1000 = vpop.permute.xlu0 %999
  %1001 = vrot.lane.b32.xlu0 %v995, 17
  %v1002 = vpop.permute.xlu0 %1001
  %1003 = vrot.lane.b32.xlu0 %v996, 17
  %v1004 = vpop.permute.xlu0 %1003
  %v1005 = vsel %vm66, %v1002, %v1004
  %v1006 = vsel %vm66, %v1000, %v1002
  %v1007 = vsel %vm66, %v998, %v1000
  %v1008 = vsel %vm66, %v1004, %v998
  %v1009 = vsel %vm79, %v1008, 0.0
  %v1010 = vsel %vm80, %v1007, 0.0
  %v1011 = vsel %vm81, %v1006, 0.0
  %v1012 = vsel %vm82, %v1005, 0.0
  %1013 = vst [vmem:[#allocation2] sm:$0xff] %v1009
  %1014 = vst [vmem:[#allocation2 + $0x8] sm:$0xff] %v1010
  %1015 = vst [vmem:[#allocation2 + $0x10] sm:$0xff] %v1011
  %1016 = vst [vmem:[#allocation2 + $0x18] sm:$0xff] %v1012
  %1017 = vrot.lane.b32.xlu0 %v993, 16
  %v1018 = vpop.permute.xlu0 %1017
  %1019 = vrot.lane.b32.xlu0 %v994, 16
  %v1020 = vpop.permute.xlu0 %1019
  %1021 = vrot.lane.b32.xlu0 %v995, 16
  %v1022 = vpop.permute.xlu0 %1021
  %1023 = vrot.lane.b32.xlu0 %v996, 16
  %v1024 = vpop.permute.xlu0 %1023
  %v1025 = vsel %vm99, %v1022, %v1024
  %v1026 = vsel %vm99, %v1020, %v1022
  %v1027 = vsel %vm99, %v1018, %v1020
  %v1028 = vsel %vm99, %v1024, %v1018
  %v1029 = vsel %vm71, %v1028, 0.0
  %v1030 = vsel %vm72, %v1027, 0.0
  %v1031 = vsel %vm73, %v1026, 0.0
  %v1032 = vsel %vm74, %v1025, 0.0
  %1033 = vst [vmem:[#allocation2 + $0x20] sm:$0xff] %v1029
  %1034 = vst [vmem:[#allocation2 + $0x28] sm:$0xff] %v1030
  %1035 = vst [vmem:[#allocation2 + $0x30] sm:$0xff] %v1031
  %1036 = vst [vmem:[#allocation2 + $0x38] sm:$0xff] %v1032
  %1037 = vrot.lane.b32.xlu0 %v993, 15
  %v1038 = vpop.permute.xlu0 %1037
  %1039 = vrot.lane.b32.xlu0 %v994, 15
  %v1040 = vpop.permute.xlu0 %1039
  %1041 = vrot.lane.b32.xlu0 %v995, 15
  %v1042 = vpop.permute.xlu0 %1041
  %1043 = vrot.lane.b32.xlu0 %v996, 15
  %v1044 = vpop.permute.xlu0 %1043
  %v1045 = vsel %vm120, %v1042, %v1044
  %v1046 = vsel %vm120, %v1040, %v1042
  %v1047 = vsel %vm120, %v1038, %v1040
  %v1048 = vsel %vm120, %v1044, %v1038
  %v1049 = vsel %vm129, %v1048, 0.0
  %v1050 = vsel %vm130, %v1047, 0.0
  %v1051 = vsel %vm131, %v1046, 0.0
  %v1052 = vsel %vm132, %v1045, 0.0
  %1053 = vst [vmem:[#allocation2 + $0x40] sm:$0xff] %v1049
  %1054 = vst [vmem:[#allocation2 + $0x48] sm:$0xff] %v1050
  %1055 = vst [vmem:[#allocation2 + $0x50] sm:$0xff] %v1051
  %1056 = vst [vmem:[#allocation2 + $0x58] sm:$0xff] %v1052
  %1057 = vrot.lane.b32.xlu0 %v993, 1
  %v1058 = vpop.permute.xlu0 %1057
  %1059 = vrot.lane.b32.xlu0 %v994, 1
  %v1060 = vpop.permute.xlu0 %1059
  %1061 = vrot.lane.b32.xlu0 %v995, 1
  %v1062 = vpop.permute.xlu0 %1061
  %1063 = vrot.lane.b32.xlu0 %v996, 1
  %v1064 = vpop.permute.xlu0 %1063
  %v1065 = vsel %vm149, %v1062, %v1064
  %v1066 = vsel %vm149, %v1060, %v1062
  %v1067 = vsel %vm149, %v1058, %v1060
  %v1068 = vsel %vm149, %v1064, %v1058
  %v1069 = vsel %vm75, %v1068, 0.0
  %v1070 = vsel %vm76, %v1067, 0.0
  %v1071 = vsel %vm77, %v1066, 0.0
  %v1072 = vsel %vm78, %v1065, 0.0
  %1073 = vst [vmem:[#allocation2 + $0x60] sm:$0xff] %v1069
  %1074 = vst [vmem:[#allocation2 + $0x68] sm:$0xff] %v1070
  %1075 = vst [vmem:[#allocation2 + $0x70] sm:$0xff] %v1071
  %1076 = vst [vmem:[#allocation2 + $0x78] sm:$0xff] %v1072
  %1077 = vst [vmem:[#allocation2 + $0x80] sm:$0xff] %v993
  %1078 = vst [vmem:[#allocation2 + $0x88] sm:$0xff] %v994
  %1079 = vst [vmem:[#allocation2 + $0x90] sm:$0xff] %v995
  %1080 = vst [vmem:[#allocation2 + $0x98] sm:$0xff] %v996
  %1081 = vrot.lane.b32.xlu0 %v993, 127
  %v1082 = vpop.permute.xlu0 %1081
  %1083 = vrot.lane.b32.xlu0 %v994, 127
  %v1084 = vpop.permute.xlu0 %1083
  %1085 = vrot.lane.b32.xlu0 %v995, 127
  %v1086 = vpop.permute.xlu0 %1085
  %1087 = vrot.lane.b32.xlu0 %v996, 127
  %v1088 = vpop.permute.xlu0 %1087
  %v1089 = vsel %vm174, %v1086, %v1088
  %v1090 = vsel %vm174, %v1084, %v1086
  %v1091 = vsel %vm174, %v1082, %v1084
  %v1092 = vsel %vm174, %v1088, %v1082
  %v1093 = vsel %vm125, %v1091, 0.0
  %v1094 = vsel %vm126, %v1090, 0.0
  %v1095 = vsel %vm127, %v1089, 0.0
  %v1096 = vsel %vm128, %v1092, 0.0
  %1097 = vst [vmem:[#allocation2 + $0xa0] sm:$0xff] %v1093
  %1098 = vst [vmem:[#allocation2 + $0xa8] sm:$0xff] %v1094
  %1099 = vst [vmem:[#allocation2 + $0xb0] sm:$0xff] %v1095
  %1100 = vst [vmem:[#allocation2 + $0xb8] sm:$0xff] %v1096
  %1101 = vrot.lane.b32.xlu0 %v993, 113
  %v1102 = vpop.permute.xlu0 %1101
  %1103 = vrot.lane.b32.xlu0 %v994, 113
  %v1104 = vpop.permute.xlu0 %1103
  %1105 = vrot.lane.b32.xlu0 %v995, 113
  %v1106 = vpop.permute.xlu0 %1105
  %1107 = vrot.lane.b32.xlu0 %v996, 113
  %v1108 = vpop.permute.xlu0 %1107
  %v1109 = vsel %vm195, %v1106, %v1108
  %v1110 = vsel %vm195, %v1104, %v1106
  %v1111 = vsel %vm195, %v1102, %v1104
  %v1112 = vsel %vm195, %v1108, %v1102
  %v1113 = vsel %vm204, %v1111, 0.0
  %v1114 = vsel %vm205, %v1110, 0.0
  %v1115 = vsel %vm206, %v1109, 0.0
  %v1116 = vsel %vm207, %v1112, 0.0
  %1117 = vst [vmem:[#allocation2 + $0xc0] sm:$0xff] %v1113
  %1118 = vst [vmem:[#allocation2 + $0xc8] sm:$0xff] %v1114
  %1119 = vst [vmem:[#allocation2 + $0xd0] sm:$0xff] %v1115
  %1120 = vst [vmem:[#allocation2 + $0xd8] sm:$0xff] %v1116
  %1121 = vrot.lane.b32.xlu0 %v993, 112
  %v1122 = vpop.permute.xlu0 %1121
  %1123 = vrot.lane.b32.xlu0 %v994, 112
  %v1124 = vpop.permute.xlu0 %1123
  %1125 = vrot.lane.b32.xlu0 %v995, 112
  %v1126 = vpop.permute.xlu0 %1125
  %1127 = vrot.lane.b32.xlu0 %v996, 112
  %v1128 = vpop.permute.xlu0 %1127
  %v1129 = vsel %vm224, %v1126, %v1128
  %v1130 = vsel %vm224, %v1124, %v1126
  %v1131 = vsel %vm224, %v1122, %v1124
  %v1132 = vsel %vm224, %v1128, %v1122
  %v1133 = vsel %vm200, %v1131, 0.0
  %v1134 = vsel %vm201, %v1130, 0.0
  %v1135 = vsel %vm202, %v1129, 0.0
  %v1136 = vsel %vm203, %v1132, 0.0
  %1137 = vst [vmem:[#allocation2 + $0xe0] sm:$0xff] %v1133
  %1138 = vst [vmem:[#allocation2 + $0xe8] sm:$0xff] %v1134
  %1139 = vst [vmem:[#allocation2 + $0xf0] sm:$0xff] %v1135
  %1140 = vst [vmem:[#allocation2 + $0xf8] sm:$0xff] %v1136
  %1141 = vrot.lane.b32.xlu0 %v993, 111
  %v1142 = vpop.permute.xlu0 %1141
  %1143 = vrot.lane.b32.xlu0 %v994, 111
  %v1144 = vpop.permute.xlu0 %1143
  %1145 = vrot.lane.b32.xlu0 %v995, 111
  %v1146 = vpop.permute.xlu0 %1145
  %1147 = vrot.lane.b32.xlu0 %v996, 111
  %v1148 = vpop.permute.xlu0 %1147
  %v1149 = vsel %vm245, %v1146, %v1148
  %v1150 = vsel %vm245, %v1144, %v1146
  %v1151 = vsel %vm245, %v1142, %v1144
  %v1152 = vsel %vm245, %v1148, %v1142
  %v1153 = vsel %vm250, %v1151, 0.0
  %v1154 = vsel %vm251, %v1150, 0.0
  %v1155 = vsel %vm252, %v1149, 0.0
  %v1156 = vsel %vm253, %v1152, 0.0
  %1157 = vst [vmem:[#allocation2 + $0x100] sm:$0xff] %v1153
  %1158 = vst [vmem:[#allocation2 + $0x108] sm:$0xff] %v1154
  %1159 = vst [vmem:[#allocation2 + $0x110] sm:$0xff] %v1155
  %1160 = vst [vmem:[#allocation2 + $0x118] sm:$0xff] %v1156
  %v1161 = vld [vmem:[%s7] sm:$0xff]
  %v1162 = vld [vmem:[#allocation2] sm:$0xff]
  %v1163 = vld [vmem:[#allocation2 + $0x8] sm:$0xff]
  %v1164 = vld [vmem:[#allocation2 + $0x10] sm:$0xff]
  %v1165 = vld [vmem:[#allocation2 + $0x18] sm:$0xff]
  %v1166 = vld [vmem:[#allocation2 + $0x20] sm:$0xff]
  %v1167 = vld [vmem:[#allocation2 + $0x28] sm:$0xff]
  %v1168 = vld [vmem:[#allocation2 + $0x30] sm:$0xff]
  %v1169 = vld [vmem:[#allocation2 + $0x38] sm:$0xff]
  %v1170 = vld [vmem:[#allocation2 + $0x40] sm:$0xff]
  %v1171 = vld [vmem:[#allocation2 + $0x48] sm:$0xff]
  %v1172 = vld [vmem:[#allocation2 + $0x50] sm:$0xff]
  %v1173 = vld [vmem:[#allocation2 + $0x58] sm:$0xff]
  %v1174 = vld [vmem:[#allocation2 + $0x60] sm:$0xff]
  %v1175 = vld [vmem:[#allocation2 + $0x68] sm:$0xff]
  %v1176 = vld [vmem:[#allocation2 + $0x70] sm:$0xff]
  %v1177 = vld [vmem:[#allocation2 + $0x78] sm:$0xff]
  %v1178 = vld [vmem:[#allocation2 + $0x80] sm:$0xff]
  %v1179 = vld [vmem:[#allocation2 + $0x88] sm:$0xff]
  %v1180 = vld [vmem:[#allocation2 + $0x90] sm:$0xff]
  %v1181 = vld [vmem:[#allocation2 + $0x98] sm:$0xff]
  %v1182 = vld [vmem:[#allocation2 + $0xa0] sm:$0xff]
  %v1183 = vld [vmem:[#allocation2 + $0xa8] sm:$0xff]
  %v1184 = vld [vmem:[#allocation2 + $0xb0] sm:$0xff]
  %v1185 = vld [vmem:[#allocation2 + $0xb8] sm:$0xff]
  %v1186 = vld [vmem:[#allocation2 + $0xc0] sm:$0xff]
  %v1187 = vld [vmem:[#allocation2 + $0xc8] sm:$0xff]
  %v1188 = vld [vmem:[#allocation2 + $0xd0] sm:$0xff]
  %v1189 = vld [vmem:[#allocation2 + $0xd8] sm:$0xff]
  %v1190 = vld [vmem:[#allocation2 + $0xe0] sm:$0xff]
  %v1191 = vld [vmem:[#allocation2 + $0xe8] sm:$0xff]
  %v1192 = vld [vmem:[#allocation2 + $0xf0] sm:$0xff]
  %v1193 = vld [vmem:[#allocation2 + $0xf8] sm:$0xff]
  %v1194 = vld [vmem:[#allocation2 + $0x100] sm:$0xff]
  %v1195 = vld [vmem:[#allocation2 + $0x108] sm:$0xff]
  %v1196 = vld [vmem:[#allocation2 + $0x110] sm:$0xff]
  %v1197 = vld [vmem:[#allocation2 + $0x118] sm:$0xff]
  %v1199 = vsel %vm494, %v1161, 0
  %1201 = vmatpush.msra.mxu0 0.0
  %1202 = vmatpush.msra.mxu0 0.0
  %1203 = vmatpush.msra.mxu0 0.0
  %1204 = vmatpush.msra.mxu0 0.0
  %1205 = vmatpush.msra.mxu0 0.0
  %1206 = vmatpush.msra.mxu0 0.0
  %1207 = vmatpush.msra.mxu0 0.0
  %1208 = vmatpush.msra.mxu0 %v1194
  %1209 = vmatpush.msra.mxu0 %v1190
  %1210 = vmatpush.msra.mxu0 %v1186
  %1211 = vmatpush.msra.mxu0 %v1182
  %1212 = vmatpush.msra.mxu0 %v1178
  %1213 = vmatpush.msra.mxu0 %v1174
  %1214 = vmatpush.msra.mxu0 %v1170
  %1215 = vmatpush.msra.mxu0 %v1166
  %1216 = vmatpush.msra.mxu0 %v1162
  %1217 = vmatmul.f32.gmra.mxu0 %v1199
  %v1218 = vpop.f32.mrf.mxu0
  %v1219 = vadd.f32 0.0, %v1218
  %1220 = vdwg.mxu0
  %1221 = vmatpush.msra.mxu0 0.0
  %1222 = vmatpush.msra.mxu0 0.0
  %1223 = vmatpush.msra.mxu0 0.0
  %1224 = vmatpush.msra.mxu0 0.0
  %1225 = vmatpush.msra.mxu0 0.0
  %1226 = vmatpush.msra.mxu0 0.0
  %1227 = vmatpush.msra.mxu0 0.0
  %1228 = vmatpush.msra.mxu0 %v1195
  %1229 = vmatpush.msra.mxu0 %v1191
  %1230 = vmatpush.msra.mxu0 %v1187
  %1231 = vmatpush.msra.mxu0 %v1183
  %1232 = vmatpush.msra.mxu0 %v1179
  %1233 = vmatpush.msra.mxu0 %v1175
  %1234 = vmatpush.msra.mxu0 %v1171
  %1235 = vmatpush.msra.mxu0 %v1167
  %1236 = vmatpush.msra.mxu0 %v1163
  %1237 = vmatmul.f32.gmra.mxu0 %v1199
  %v1238 = vpop.f32.mrf.mxu0
  %v1239 = vadd.f32 0.0, %v1238
  %1240 = vdwg.mxu0
  %1241 = vmatpush.msra.mxu0 0.0
  %1242 = vmatpush.msra.mxu0 0.0
  %1243 = vmatpush.msra.mxu0 0.0
  %1244 = vmatpush.msra.mxu0 0.0
  %1245 = vmatpush.msra.mxu0 0.0
  %1246 = vmatpush.msra.mxu0 0.0
  %1247 = vmatpush.msra.mxu0 0.0
  %1248 = vmatpush.msra.mxu0 %v1196
  %1249 = vmatpush.msra.mxu0 %v1192
  %1250 = vmatpush.msra.mxu0 %v1188
  %1251 = vmatpush.msra.mxu0 %v1184
  %1252 = vmatpush.msra.mxu0 %v1180
  %1253 = vmatpush.msra.mxu0 %v1176
  %1254 = vmatpush.msra.mxu0 %v1172
  %1255 = vmatpush.msra.mxu0 %v1168
  %1256 = vmatpush.msra.mxu0 %v1164
  %1257 = vmatmul.f32.gmra.mxu0 %v1199
  %v1258 = vpop.f32.mrf.mxu0
  %v1259 = vadd.f32 0.0, %v1258
  %1260 = vdwg.mxu0
  %1261 = vmatpush.msra.mxu0 0.0
  %1262 = vmatpush.msra.mxu0 0.0
  %1263 = vmatpush.msra.mxu0 0.0
  %1264 = vmatpush.msra.mxu0 0.0
  %1265 = vmatpush.msra.mxu0 0.0
  %1266 = vmatpush.msra.mxu0 0.0
  %1267 = vmatpush.msra.mxu0 0.0
  %1268 = vmatpush.msra.mxu0 %v1197
  %1269 = vmatpush.msra.mxu0 %v1193
  %1270 = vmatpush.msra.mxu0 %v1189
  %1271 = vmatpush.msra.mxu0 %v1185
  %1272 = vmatpush.msra.mxu0 %v1181
  %1273 = vmatpush.msra.mxu0 %v1177
  %1274 = vmatpush.msra.mxu0 %v1173
  %1275 = vmatpush.msra.mxu0 %v1169
  %1276 = vmatpush.msra.mxu0 %v1165
  %1277 = vmatmul.f32.gmra.mxu0 %v1199
  %v1278 = vpop.f32.mrf.mxu0
  %v1279 = vadd.f32 0.0, %v1278
  %1280 = vdwg.mxu0
  %v1281 = vstv %s751
  %v1282 = vmul.f32 %v1219, %v1281
  %v1283 = vmul.f32 %v1239, %v1281
  %v1284 = vmul.f32 %v1259, %v1281
  %v1285 = vmul.f32 %v1279, %v1281
  %v1286 = vld [vmem:[%s8] sm:$0xff]
  %1288 = vset.pattern.permute.xlu0 0
  %1289 = vperm.xlu0 %1288, %v1286
  %v1290 = vpop.permute.xlu0 %1289
  %v1292 = vadd.f32 %v1282, %v1290
  %v1293 = vadd.f32 %v1283, %v1290
  %v1294 = vadd.f32 %v1284, %v1290
  %v1295 = vadd.f32 %v1285, %v1290
  %v1296 = vadd.f32 %v854, %v1292
  %v1297 = vadd.f32 %v855, %v1293
  %v1298 = vadd.f32 %v856, %v1294
  %v1299 = vadd.f32 %v857, %v1295
  %v1300 = vadd.f32 %v1296, %v37
  %v1301 = vadd.f32 %v1297, %v38
  %v1302 = vadd.f32 %v1298, %v39
  %v1303 = vadd.f32 %v1299, %v40
  %1304 = vst [vmem:[%s10] sm:$0xff] %v1300
  %1305 = vst [vmem:[%s10 + $0x8] sm:$0xff] %v1301
  %1306 = vst [vmem:[%s10 + $0x10] sm:$0xff] %v1302
  %1307 = vst [vmem:[%s10 + $0x18] sm:$0xff] %v1303
  // Predicated region
  $region42: #{projblock_forward.1} parent=0 // pred_check
    _
  $region43: #{projblock_forward.1} parent=0 // pred_check_branch
    %1309 = sbr.rel (0) target = $region45
  $region44: #{projblock_forward.1} parent=0 // pred_region
    _
  $region45: #{projblock_forward.1} parent=0 // pred_fallthru
    _
  // Predicated region
  $region46: #{projblock_forward.1} parent=0 // pred_check
    _
  $region47: #{projblock_forward.1} parent=0 // pred_check_branch
    %1311 = sbr.rel (0) target = $region49
  $region48: #{projblock_forward.1} parent=0 // pred_region
    _
  $region49: #{projblock_forward.1} parent=0 // pred_fallthru
    _
  // Predicated region
  $region50: #{projblock_forward.1} parent=0 // pred_check
    _
  $region51: #{projblock_forward.1} parent=0 // pred_check_branch
    %1313 = sbr.rel (0) target = $region53
  $region52: #{projblock_forward.1} parent=0 // pred_region
    _
  $region53: #{projblock_forward.1} parent=0 // pred_fallthru
    _
  // Predicated region
  $region54: #{projblock_forward.1} parent=0 // pred_check
    _
  $region55: #{projblock_forward.1} parent=0 // pred_check_branch
    %1315 = sbr.rel (0) target = $region57
  $region56: #{projblock_forward.1} parent=0 // pred_region
    _
  $region57: #{projblock_forward.1} parent=0 // pred_fallthru
    _

</llo_original>
